<compile_context>
chip_gen: v6e
topology: v6e:2x2x1
jax: 0.10.0
libtpu: 0.0.40
codegen_flags: <defaults>
</compile_context>

<pallas_src>
import jax
import jax.numpy as jnp
from jax.experimental import pallas as pl
from jax.experimental.pallas import tpu as pltpu

# ----------------------------- configuration --------------------------------
E = 32                # embedding_dim
H = 32                # hidden_dim (== E, required by the dynamic attention path)
L = 16                # label_size
S = 8                 # raw sequence length of each window tensor
SE = S * E            # flattened window features (256)
CONTEXT_WINDOW = 4
MENTION_WINDOW = 3

B = 256               # total mentions (batch)
BT = 128              # batch tile (grid=2 -> both TensorCores on v7x; use 256 on v5e)

LANES = 128           # padded feature width of every matmul operand / output

# row offsets inside the packed bf16 parameter slab
_R_WL = 0                     # [256,128] left-encoder  (window mask + 1/CW folded in)
_R_WR = SE                    # [256,128] right-encoder
_R_WM = 2 * SE                # [256,128] mention-encoder (1/MW folded in)
_R_WA = 3 * SE                # [128,128] attention weights (rows 2H:3H, cols 0:3)
_R_PSEL = _R_WA + 128         # [128,128] softmax numerator selector (groups onto H-lane blocks)
_R_QONE = _R_PSEL + 128       # [128,128] softmax denominator broadcaster (rows 0:3 all ones)
_R_W1 = _R_QONE + 128         # [128,128] layer_1 (rows 0:3H, cols 0:H)
_R_W2H = _R_W1 + 128          # [128,128] hidden2tag @ hierarchy (rows 0:H, cols 0:L)
SLAB_ROWS = _R_W2H + 128      # 1408


# ------------------------------- kernel --------------------------------------
def mention_level_kernel(xl_ref, xr_ref, xm_ref, slab_ref, bias_ref, out_ref):
    # xl/xr/xm_ref : [BT, S*E] f32 flattened windows
    # slab_ref     : [1408, 128] bf16 packed parameters (see pack_params)
    # bias_ref     : [8, 128] f32   row0=b_enc, row1=b_attn, row2=b1, row3=b2@hier
    # out_ref      : [BT, 128] f32  logits in lanes 0:L, zeros elsewhere
    f32 = jnp.float32
    bf16 = jnp.bfloat16

    b_enc = bias_ref[0:1, :]
    b_att = bias_ref[1:2, :]
    b_1 = bias_ref[2:3, :]
    b_2h = bias_ref[3:4, :]

    # --- fused left/right/mention encoders -----------------------------------
    # Window slice + mean pooling folded into the [S*E,128] weights; three
    # accumulating K=256 matmuls (bf16 operands, f32 accumulation).
    enc = jnp.dot(xl_ref[...].astype(bf16), slab_ref[_R_WL:_R_WL + SE, :],
                  preferred_element_type=f32)
    enc = enc + jnp.dot(xr_ref[...].astype(bf16), slab_ref[_R_WR:_R_WR + SE, :],
                        preferred_element_type=f32)
    enc = enc + jnp.dot(xm_ref[...].astype(bf16), slab_ref[_R_WM:_R_WM + SE, :],
                        preferred_element_type=f32)
    # TODO(synk): dropout (p=0.5) omitted — kernel implements inference/eval mode.
    enc = jnp.maximum(enc + b_enc, 0.0)            # [BT,128]; lanes 0:H|H:2H|2H:3H = xl|xr|xm
    enc_bf = enc.astype(bf16)

    # --- dynamic attention, full lane width -----------------------------------
    # logits live in lanes 0:3; lanes 3:128 are exactly 0 (zero weight cols / bias).
    logits = jnp.dot(enc_bf, slab_ref[_R_WA:_R_WA + 128, :],
                     preferred_element_type=f32) + b_att
    # Per-row max over lanes {0,1,2} (plus a harmless 0) produced at lanes 0..2 via
    # XLU rotations — no cross-lane reduce, no [BT,1] column temporaries.
    m = logits
    for s in (1, 2, LANES - 2, LANES - 1):
        m = jnp.maximum(m, pltpu.roll(logits, shift=s, axis=1))
    e = jnp.exp(logits - m)                        # junk lanes give exp(-m) <= 1 and are
    e_bf = e.astype(bf16)                          # annihilated by the selector matmuls.
    num = jnp.dot(e_bf, slab_ref[_R_PSEL:_R_PSEL + 128, :],
                  preferred_element_type=f32)      # grouped numerator per H-lane block
    den = jnp.dot(e_bf, slab_ref[_R_QONE:_R_QONE + 128, :],
                  preferred_element_type=f32)      # e0+e1+e2 broadcast to every lane
    joined = enc * num * pl.reciprocal(den, approx=True)   # attention-scaled concat

    # --- layer_1 + relu --------------------------------------------------------
    h = jnp.dot(joined.astype(bf16), slab_ref[_R_W1:_R_W1 + 128, :],
                preferred_element_type=f32) + b_1
    h = jnp.maximum(h, 0.0)

    # --- hidden2tag with the hierarchy matrix pre-folded in --------------------
    out_ref[...] = jnp.dot(h.astype(bf16), slab_ref[_R_W2H:_R_W2H + 128, :],
                           preferred_element_type=f32) + b_2h


# -------------------------- host-side packing --------------------------------
def _window_weight(w, window, col_off):
    """[E,H] encoder weight -> [S*E,128] block with window mask + 1/window folded in."""
    blk = jnp.zeros((E, LANES), jnp.float32).at[:, col_off:col_off + H].set(w / window)
    return jnp.concatenate(
        [jnp.tile(blk, (window, 1)),
         jnp.zeros(((S - window) * E, LANES), jnp.float32)], axis=0)


def pack_params(params):
    """Pack all weights + softmax constants into one bf16 [1408,128] slab + f32 biases."""
    (wl, bl, wr, br, wm, bm, wa, ba, w1, b1, w2, b2, hier) = params
    f32 = jnp.float32

    w_l = _window_weight(wl, CONTEXT_WINDOW, 0)
    w_r = _window_weight(wr, CONTEXT_WINDOW, H)
    w_m = _window_weight(wm, MENTION_WINDOW, 2 * H)

    w_att = jnp.zeros((128, LANES), f32).at[2 * H:3 * H, 0:3].set(wa)

    # Softmax constants: P groups the 3 exp'd logits onto their H-lane blocks; Q
    # broadcasts the denominator to every lane (all-ones rows => never a zero
    # denominator). Rows 3:128 are zero so junk exp lanes vanish exactly.
    p_sel = jnp.zeros((128, LANES), f32)
    p_sel = p_sel.at[0, 0:H].set(1.0).at[1, H:2 * H].set(1.0).at[2, 2 * H:3 * H].set(1.0)
    q_one = jnp.zeros((128, LANES), f32).at[0:3, :].set(1.0)

    w_1 = jnp.zeros((128, LANES), f32).at[0:3 * H, 0:H].set(w1)

    w2h = w2 @ hier                                 # fold hierarchy (exact, reassociated)
    b2h = b2[0] @ hier
    w_2h = jnp.zeros((128, LANES), f32).at[0:H, 0:L].set(w2h)

    slab = jnp.concatenate([w_l, w_r, w_m, w_att, p_sel, q_one, w_1, w_2h],
                           axis=0).astype(jnp.bfloat16)            # [1408,128] bf16

    bias = jnp.zeros((8, LANES), f32)
    bias = bias.at[0, 0:H].set(bl[0]).at[0, H:2 * H].set(br[0]).at[0, 2 * H:3 * H].set(bm[0])
    bias = bias.at[1, 0:3].set(ba[0])
    bias = bias.at[2, 0:H].set(b1[0])
    bias = bias.at[3, 0:L].set(b2h)
    return slab, bias


@jax.jit
def mention_level_forward(batch_xl, batch_xr, batch_xa, batch_xm, params):
    del batch_xa                                    # unused in the original forward
    n = batch_xl.shape[0]
    # metadata-only flattening — no packing / padding pass over the inputs
    xl = batch_xl.reshape(n, SE)
    xr = batch_xr.reshape(n, SE)
    xm = batch_xm.reshape(n, SE)

    pad = (-n) % BT                                 # handle ragged batches
    if pad:
        xl = jnp.pad(xl, ((0, pad), (0, 0)))
        xr = jnp.pad(xr, ((0, pad), (0, 0)))
        xm = jnp.pad(xm, ((0, pad), (0, 0)))
    nt = n + pad

    slab, bias = pack_params(params)

    out = pl.pallas_call(
        mention_level_kernel,
        out_shape=jax.ShapeDtypeStruct((nt, LANES), jnp.float32),
        grid=(nt // BT,),
        in_specs=[
            pl.BlockSpec((BT, SE), lambda i: (i, 0)),
            pl.BlockSpec((BT, SE), lambda i: (i, 0)),
            pl.BlockSpec((BT, SE), lambda i: (i, 0)),
            pl.BlockSpec((SLAB_ROWS, LANES), lambda i: (0, 0)),   # params stay VMEM-resident
            pl.BlockSpec((8, LANES), lambda i: (0, 0)),           # f32 biases
        ],
        out_specs=pl.BlockSpec((BT, LANES), lambda i: (i, 0)),
        compiler_params=pltpu.CompilerParams(
            dimension_semantics=("parallel",)),                   # both TCs on v7x
    )(xl, xr, xm, slab, bias)
    # Lane-padded [n,128] output: logits in lanes 0:L; the slice is left to the
    # consumer so no trailing copy pass is emitted here.
    return out if pad == 0 else out[:n]


# ------------------------------ reference ------------------------------------
def reference_forward(batch_xl, batch_xr, batch_xa, batch_xm, params):
    """Plain-JAX reference mirroring the PyTorch forward (eval mode)."""
    del batch_xa
    (wl, bl, wr, br, wm, bm, wa, ba, w1, b1, w2, b2, hier) = params
    xl = jnp.mean(batch_xl[:, :CONTEXT_WINDOW, :], axis=1)
    xr = jnp.mean(batch_xr[:, :CONTEXT_WINDOW, :], axis=1)
    xm = jnp.mean(batch_xm[:, :MENTION_WINDOW, :], axis=1)
    xl = jax.nn.relu(xl @ wl + bl[0])
    xr = jax.nn.relu(xr @ wr + br[0])
    xm = jax.nn.relu(xm @ wm + bm[0])
    attn = jax.nn.softmax(xm @ wa + ba[0], axis=1)
    joined = jnp.stack([xl, xr, xm], axis=1) * attn[:, :, None]
    joined = joined.reshape(xm.shape[0], 3 * H)
    h = jax.nn.relu(joined @ w1 + b1[0])
    y = h @ w2 + b2[0]
    y = (y.reshape(-1, hier.shape[0]) @ hier).reshape(-1, L)
    return y


def make_params(key):
    ks = jax.random.split(key, 7)

    def lin(k, fin, fout):
        kw, kb = jax.random.split(k)
        bound = 1.0 / jnp.sqrt(fin)
        w = jax.random.uniform(kw, (fin, fout), jnp.float32, -bound, bound)
        b = jax.random.uniform(kb, (1, fout), jnp.float32, -bound, bound)
        return w, b

    wl, bl = lin(ks[0], E, H)
    wr, br = lin(ks[1], E, H)
    wm, bm = lin(ks[2], E, H)
    wa, ba = lin(ks[3], H, 3)          # attention_layer (E == H)
    w1, b1 = lin(ks[4], 3 * H, H)      # layer_1
    w2, b2 = lin(ks[5], H, L)          # hidden2tag
    hier = jax.random.uniform(ks[6], (L, L), jnp.float32, 0.0, 1.0)
    return (wl, bl, wr, br, wm, bm, wa, ba, w1, b1, w2, b2, hier)


if __name__ == "__main__":
    key = jax.random.PRNGKey(0)
    k_xl, k_xr, k_xa, k_xm, k_p = jax.random.split(key, 5)
    batch_xl = jax.random.normal(k_xl, (B, S, E), jnp.float32)
    batch_xr = jax.random.normal(k_xr, (B, S, E), jnp.float32)
    batch_xa = jax.random.normal(k_xa, (B, S, E), jnp.float32)   # unused, as in PyTorch forward
    batch_xm = jax.random.normal(k_xm, (B, S, E), jnp.float32)
    params = make_params(k_p)

    y_pad = jax.block_until_ready(
        mention_level_forward(batch_xl, batch_xr, batch_xa, batch_xm, params))
    assert y_pad.shape == (B, LANES)
    y_kernel = y_pad[:, :L]                        # consumer-side slice of the padded slab
    y_ref = reference_forward(batch_xl, batch_xr, batch_xa, batch_xm, params)

    # Tolerance covers bf16 matmul operands (f32 accumulation), the approximate (EUP)
    # softmax reciprocal, and the re-associated folds (mean pooling into the encoder
    # weights, hierarchy into hidden2tag).
    assert jnp.allclose(y_kernel, y_ref, atol=2e-2, rtol=2e-2), "mismatch vs JAX reference"

    print("KERNEL_OK")
</pallas_src>

<mosaic_0001>
module attributes {stable_mosaic.version = 11 : i64} {
  func.func @mention_level_kernel(%arg0: i32, %arg1: memref<128x256xf32, #tpu.memory_space<vmem>>, %arg2: memref<128x256xf32, #tpu.memory_space<vmem>>, %arg3: memref<128x256xf32, #tpu.memory_space<vmem>>, %arg4: memref<1408x128xbf16, #tpu.memory_space<vmem>>, %arg5: memref<8x128xf32, #tpu.memory_space<vmem>>, %arg6: memref<128x128xf32, #tpu.memory_space<vmem>>) attributes {dimension_semantics = [#tpu.dimension_semantics<parallel>], iteration_bounds = array<i64: 2>, scalar_prefetch = 0 : i64, scratch_operands = 0 : i64, tpu.core_type = #tpu.core_type<tc>, window_params = [{transform_indices = @transform_0, window_bounds = array<i64: 128, 256>}, {transform_indices = @transform_1, window_bounds = array<i64: 128, 256>}, {transform_indices = @transform_2, window_bounds = array<i64: 128, 256>}, {pipeline_mode = #tpu.pipeline_mode<synchronous>, transform_indices = @transform_3, window_bounds = array<i64: 1408, 128>}, {pipeline_mode = #tpu.pipeline_mode<synchronous>, transform_indices = @transform_4, window_bounds = array<i64: 8, 128>}, {transform_indices = @transform_5, window_bounds = array<i64: 128, 128>}]} {
    %c0 = arith.constant 0 : index
    %c0_0 = arith.constant 0 : index
    %0 = vector.load %arg5[%c0, %c0_0] : memref<8x128xf32, #tpu.memory_space<vmem>>, vector<1x128xf32>
    %c1 = arith.constant 1 : index
    %c0_1 = arith.constant 0 : index
    %1 = vector.load %arg5[%c1, %c0_1] : memref<8x128xf32, #tpu.memory_space<vmem>>, vector<1x128xf32>
    %c2 = arith.constant 2 : index
    %c0_2 = arith.constant 0 : index
    %2 = vector.load %arg5[%c2, %c0_2] : memref<8x128xf32, #tpu.memory_space<vmem>>, vector<1x128xf32>
    %c3 = arith.constant 3 : index
    %c0_3 = arith.constant 0 : index
    %3 = vector.load %arg5[%c3, %c0_3] : memref<8x128xf32, #tpu.memory_space<vmem>>, vector<1x128xf32>
    %c0_4 = arith.constant 0 : index
    %c0_5 = arith.constant 0 : index
    %4 = vector.load %arg1[%c0_4, %c0_5] : memref<128x256xf32, #tpu.memory_space<vmem>>, vector<128x256xf32>
    %5 = arith.truncf %4 : vector<128x256xf32> to vector<128x256xbf16>
    %c0_6 = arith.constant 0 : index
    %c0_7 = arith.constant 0 : index
    %6 = vector.load %arg4[%c0_6, %c0_7] : memref<1408x128xbf16, #tpu.memory_space<vmem>>, vector<256x128xbf16>
    %cst = arith.constant dense<0.000000e+00> : vector<128x128xf32>
    %7 = tpu.matmul %5, %6, %cst {dimension_numbers = #tpu.dot_dimension_numbers<[1], [0], [0], [1], [0, 0, 1, 1], [], []>} : vector<128x256xbf16>, vector<256x128xbf16>, vector<128x128xf32> -> vector<128x128xf32>
    %c0_8 = arith.constant 0 : index
    %c0_9 = arith.constant 0 : index
    %8 = vector.load %arg2[%c0_8, %c0_9] : memref<128x256xf32, #tpu.memory_space<vmem>>, vector<128x256xf32>
    %9 = arith.truncf %8 : vector<128x256xf32> to vector<128x256xbf16>
    %c256 = arith.constant 256 : index
    %c0_10 = arith.constant 0 : index
    %10 = vector.load %arg4[%c256, %c0_10] : memref<1408x128xbf16, #tpu.memory_space<vmem>>, vector<256x128xbf16>
    %cst_11 = arith.constant dense<0.000000e+00> : vector<128x128xf32>
    %11 = tpu.matmul %9, %10, %cst_11 {dimension_numbers = #tpu.dot_dimension_numbers<[1], [0], [0], [1], [0, 0, 1, 1], [], []>} : vector<128x256xbf16>, vector<256x128xbf16>, vector<128x128xf32> -> vector<128x128xf32>
    %12 = arith.addf %7, %11 : vector<128x128xf32>
    %c0_12 = arith.constant 0 : index
    %c0_13 = arith.constant 0 : index
    %13 = vector.load %arg3[%c0_12, %c0_13] : memref<128x256xf32, #tpu.memory_space<vmem>>, vector<128x256xf32>
    %14 = arith.truncf %13 : vector<128x256xf32> to vector<128x256xbf16>
    %c512 = arith.constant 512 : index
    %c0_14 = arith.constant 0 : index
    %15 = vector.load %arg4[%c512, %c0_14] : memref<1408x128xbf16, #tpu.memory_space<vmem>>, vector<256x128xbf16>
    %cst_15 = arith.constant dense<0.000000e+00> : vector<128x128xf32>
    %16 = tpu.matmul %14, %15, %cst_15 {dimension_numbers = #tpu.dot_dimension_numbers<[1], [0], [0], [1], [0, 0, 1, 1], [], []>} : vector<128x256xbf16>, vector<256x128xbf16>, vector<128x128xf32> -> vector<128x128xf32>
    %17 = arith.addf %12, %16 : vector<128x128xf32>
    %18 = vector.broadcast %0 : vector<1x128xf32> to vector<128x128xf32>
    %19 = arith.addf %17, %18 : vector<128x128xf32>
    %cst_16 = arith.constant 0.000000e+00 : f32
    %20 = vector.broadcast %cst_16 : f32 to vector<128x128xf32>
    %21 = arith.maximumf %19, %20 : vector<128x128xf32>
    %22 = arith.truncf %21 : vector<128x128xf32> to vector<128x128xbf16>
    %c768 = arith.constant 768 : index
    %c0_17 = arith.constant 0 : index
    %23 = vector.load %arg4[%c768, %c0_17] : memref<1408x128xbf16, #tpu.memory_space<vmem>>, vector<128x128xbf16>
    %cst_18 = arith.constant dense<0.000000e+00> : vector<128x128xf32>
    %24 = tpu.matmul %22, %23, %cst_18 {dimension_numbers = #tpu.dot_dimension_numbers<[1], [0], [0], [1], [0, 0, 1, 1], [], []>} : vector<128x128xbf16>, vector<128x128xbf16>, vector<128x128xf32> -> vector<128x128xf32>
    %25 = vector.broadcast %1 : vector<1x128xf32> to vector<128x128xf32>
    %26 = arith.addf %24, %25 : vector<128x128xf32>
    %c1_i32 = arith.constant 1 : i32
    %27 = tpu.dynamic_rotate %26 by %c1_i32 dim 1 : vector<128x128xf32>, i32 -> vector<128x128xf32>
    %28 = arith.maximumf %26, %27 : vector<128x128xf32>
    %c2_i32 = arith.constant 2 : i32
    %29 = tpu.dynamic_rotate %26 by %c2_i32 dim 1 : vector<128x128xf32>, i32 -> vector<128x128xf32>
    %30 = arith.maximumf %28, %29 : vector<128x128xf32>
    %c126_i32 = arith.constant 126 : i32
    %31 = tpu.dynamic_rotate %26 by %c126_i32 dim 1 : vector<128x128xf32>, i32 -> vector<128x128xf32>
    %32 = arith.maximumf %30, %31 : vector<128x128xf32>
    %c127_i32 = arith.constant 127 : i32
    %33 = tpu.dynamic_rotate %26 by %c127_i32 dim 1 : vector<128x128xf32>, i32 -> vector<128x128xf32>
    %34 = arith.maximumf %32, %33 : vector<128x128xf32>
    %35 = arith.subf %26, %34 : vector<128x128xf32>
    %36 = math.exp %35 : vector<128x128xf32>
    %37 = arith.truncf %36 : vector<128x128xf32> to vector<128x128xbf16>
    %c896 = arith.constant 896 : index
    %c0_19 = arith.constant 0 : index
    %38 = vector.load %arg4[%c896, %c0_19] : memref<1408x128xbf16, #tpu.memory_space<vmem>>, vector<128x128xbf16>
    %cst_20 = arith.constant dense<0.000000e+00> : vector<128x128xf32>
    %39 = tpu.matmul %37, %38, %cst_20 {dimension_numbers = #tpu.dot_dimension_numbers<[1], [0], [0], [1], [0, 0, 1, 1], [], []>} : vector<128x128xbf16>, vector<128x128xbf16>, vector<128x128xf32> -> vector<128x128xf32>
    %c1024 = arith.constant 1024 : index
    %c0_21 = arith.constant 0 : index
    %40 = vector.load %arg4[%c1024, %c0_21] : memref<1408x128xbf16, #tpu.memory_space<vmem>>, vector<128x128xbf16>
    %cst_22 = arith.constant dense<0.000000e+00> : vector<128x128xf32>
    %41 = tpu.matmul %37, %40, %cst_22 {dimension_numbers = #tpu.dot_dimension_numbers<[1], [0], [0], [1], [0, 0, 1, 1], [], []>} : vector<128x128xbf16>, vector<128x128xbf16>, vector<128x128xf32> -> vector<128x128xf32>
    %42 = arith.mulf %21, %39 : vector<128x128xf32>
    %43 = tpu.reciprocal %41 {approx = true} : vector<128x128xf32> -> vector<128x128xf32>
    %44 = arith.mulf %42, %43 : vector<128x128xf32>
    %45 = arith.truncf %44 : vector<128x128xf32> to vector<128x128xbf16>
    %c1152 = arith.constant 1152 : index
    %c0_23 = arith.constant 0 : index
    %46 = vector.load %arg4[%c1152, %c0_23] : memref<1408x128xbf16, #tpu.memory_space<vmem>>, vector<128x128xbf16>
    %cst_24 = arith.constant dense<0.000000e+00> : vector<128x128xf32>
    %47 = tpu.matmul %45, %46, %cst_24 {dimension_numbers = #tpu.dot_dimension_numbers<[1], [0], [0], [1], [0, 0, 1, 1], [], []>} : vector<128x128xbf16>, vector<128x128xbf16>, vector<128x128xf32> -> vector<128x128xf32>
    %48 = vector.broadcast %2 : vector<1x128xf32> to vector<128x128xf32>
    %49 = arith.addf %47, %48 : vector<128x128xf32>
    %cst_25 = arith.constant 0.000000e+00 : f32
    %50 = vector.broadcast %cst_25 : f32 to vector<128x128xf32>
    %51 = arith.maximumf %49, %50 : vector<128x128xf32>
    %52 = arith.truncf %51 : vector<128x128xf32> to vector<128x128xbf16>
    %c1280 = arith.constant 1280 : index
    %c0_26 = arith.constant 0 : index
    %53 = vector.load %arg4[%c1280, %c0_26] : memref<1408x128xbf16, #tpu.memory_space<vmem>>, vector<128x128xbf16>
    %cst_27 = arith.constant dense<0.000000e+00> : vector<128x128xf32>
    %54 = tpu.matmul %52, %53, %cst_27 {dimension_numbers = #tpu.dot_dimension_numbers<[1], [0], [0], [1], [0, 0, 1, 1], [], []>} : vector<128x128xbf16>, vector<128x128xbf16>, vector<128x128xf32> -> vector<128x128xf32>
    %55 = vector.broadcast %3 : vector<1x128xf32> to vector<128x128xf32>
    %56 = arith.addf %54, %55 : vector<128x128xf32>
    %c0_28 = arith.constant 0 : index
    %c0_29 = arith.constant 0 : index
    %57 = vector.load %arg6[%c0_28, %c0_29] : memref<128x128xf32, #tpu.memory_space<vmem>>, vector<128x128xf32>
    tpu.vector_store %arg6[%c0_28, %c0_29], %56 {strides = array<i32>} : memref<128x128xf32, #tpu.memory_space<vmem>>, vector<128x128xf32>,
    return
  }
  func.func @transform_0(%arg0: i32) -> (i32, i32) {
    %c0_i32 = arith.constant 0 : i32
    %c0_i32_0 = arith.constant 0 : i32
    return %arg0, %c0_i32 : i32, i32
  }
  func.func @transform_1(%arg0: i32) -> (i32, i32) {
    %c0_i32 = arith.constant 0 : i32
    %c0_i32_0 = arith.constant 0 : i32
    return %arg0, %c0_i32 : i32, i32
  }
  func.func @transform_2(%arg0: i32) -> (i32, i32) {
    %c0_i32 = arith.constant 0 : i32
    %c0_i32_0 = arith.constant 0 : i32
    return %arg0, %c0_i32 : i32, i32
  }
  func.func @transform_3(%arg0: i32) -> (i32, i32) {
    %c0_i32 = arith.constant 0 : i32
    %c0_i32_0 = arith.constant 0 : i32
    %c0_i32_1 = arith.constant 0 : i32
    return %c0_i32, %c0_i32_0 : i32, i32
  }
  func.func @transform_4(%arg0: i32) -> (i32, i32) {
    %c0_i32 = arith.constant 0 : i32
    %c0_i32_0 = arith.constant 0 : i32
    %c0_i32_1 = arith.constant 0 : i32
    return %c0_i32, %c0_i32_0 : i32, i32
  }
  func.func @transform_5(%arg0: i32) -> (i32, i32) {
    %c0_i32 = arith.constant 0 : i32
    %c0_i32_0 = arith.constant 0 : i32
    return %arg0, %c0_i32 : i32, i32
  }
}

</mosaic_0001>

<llo_original>
// kernel: mention_level_forward.1
$region0: #{mention_level_forward.1}
  #allocation0 [shape = 'u32[]', space=smem, size = 0x4, offset = 0x4, fixed_abs, tag = 'smem constant byte address 0x4 - core index']
  #allocation1 [shape = 'u32[144,128]{1,0:T(1,128)}', space=vmem, size = 0x12000, scoped, tag = 'internal scratch']
  %s0 = inlined_call_operand.vmem [shape: f32[256,256], index: 0, kind: input, shape index: {}]
  %s1 = inlined_call_operand.vmem [shape: f32[256,256], index: 1, kind: input, shape index: {}]
  %s2 = inlined_call_operand.vmem [shape: f32[256,256], index: 2, kind: input, shape index: {}]
  %s3 = inlined_call_operand.vmem [shape: bf16[1408,128], index: 3, kind: input, shape index: {}]
  %s4 = inlined_call_operand.vmem [shape: f32[8,128], index: 4, kind: input, shape index: {}]
  %s5 = inlined_call_operand.hbm [shape: f32[256,128], index: 5, kind: output, shape index: {}]
  %s6 = sld [smem:[#allocation0]]
  $region53: #{mention_level_forward.1} parent=0
    _
  %s8 = ssub.s32 1, %s6
  %s9 = scalar_select 0, %s8, %s6
  $region1: #{mention_level_forward.1} parent=0
    #allocation2 [shape = 'u8[131072]{0}', space=vmem, size = 0x20000, scoped, tag = 'output window, operand 0']
    #allocation3 [shape = 's32[2]{0}', space=sflag, size = 0x8, scoped, tag = 'scoped memory for mention_level_forward.1']
    %10 = vsyncpa [#allocation3], 0
    %s11 = scalar_lea.sflag [#allocation3], 1
    %12 = vsyncpa %s11, 0
    loop: start=0, step=1, limit=4
    $region2: #{mention_level_forward.1} parent=1 // loop_pre_header
      _
    $region3: #{mention_level_forward.1} parent=1 // loop_header
      %s14 = sphi 0, %s18
      %p15 = scmp.ge.s32.totalorder %s14, 4
      %s24 = sphi 0, %s26
      %s27 = sphi 0, %s24
      %s28 = sphi 0, %s27
      %s44 = sphi 0, %s28
      %s50 = sphi 0, %s52
      %s53 = sphi 0, %s50
      %s54 = sphi 0, %s53
      %s70 = sphi 0, %s54
      %s76 = sphi 0, %s78
      %s79 = sphi 0, %s76
      %s80 = sphi 0, %s79
      %s96 = sphi 0, %s80
      %s100 = sphi 0, %s100
      %s102 = sphi 0, %s100
      %s103 = sphi 0, %s102
      %s117 = sphi 0, %s103
      %s121 = sphi 0, %s121
      %s123 = sphi 0, %s121
      %s124 = sphi 0, %s123
      %s138 = sphi 0, %s124
      %s144 = sphi 0, %s146
      %s147 = sphi 0, %s144
      %s148 = sphi 0, %s147
      %s164 = sphi 0, %s148
    $region4: #{mention_level_forward.1} parent=1 // loop_header_branch
      %17 = sbr.rel (%p15) target = $region8
    $region5: #{mention_level_forward.1} parent=1 // loop_body
      %s19 = ssub.s32 %s14, 1
      %s20 = ssub.s32 %s14, 2
      %s21 = sadd.s32 %s14, 1
      %s22 = ssub.s32 %s14, %s21
      %p23 = scmp.eq.s32.totalorder %s22, 0
      %s25 = sadd.s32 %s24, 1
      %s26 = scalar_select %p23, %s24, %s25
      %p29 = pneg %p23
      %p30 = scmp.eq.s32.totalorder %s14, 1
      %p31 = por %p29, %p30
      %p32 = scmp.ne.s32.totalorder %s24, %s27
      %p33 = scmp.eq.s32.totalorder %s14, 0
      %p34 = por %p32, %p33
      %p35 = scmp.ne.s32.totalorder %s24, %s27
      %p36 = scmp.eq.s32.totalorder %s19, 1
      %p37 = por %p35, %p36
      %p38 = scmp.ne.s32.totalorder %s27, %s28
      %p39 = scmp.eq.s32.totalorder %s19, 0
      %p40 = por %p38, %p39
      %p41 = scmp.ne.s32.totalorder %s27, %s28
      %p42 = scmp.eq.s32.totalorder %s20, 1
      %p43 = por %p41, %p42
      %p45 = scmp.ne.s32.totalorder %s28, %s44
      %p46 = scmp.eq.s32.totalorder %s20, 0
      %p47 = por %p45, %p46
      %s48 = ssub.s32 %s14, %s21
      %p49 = scmp.eq.s32.totalorder %s48, 0
      %s51 = sadd.s32 %s50, 1
      %s52 = scalar_select %p49, %s50, %s51
      %p55 = pneg %p49
      %p56 = scmp.eq.s32.totalorder %s14, 1
      %p57 = por %p55, %p56
      %p58 = scmp.ne.s32.totalorder %s50, %s53
      %p59 = scmp.eq.s32.totalorder %s14, 0
      %p60 = por %p58, %p59
      %p61 = scmp.ne.s32.totalorder %s50, %s53
      %p62 = scmp.eq.s32.totalorder %s19, 1
      %p63 = por %p61, %p62
      %p64 = scmp.ne.s32.totalorder %s53, %s54
      %p65 = scmp.eq.s32.totalorder %s19, 0
      %p66 = por %p64, %p65
      %p67 = scmp.ne.s32.totalorder %s53, %s54
      %p68 = scmp.eq.s32.totalorder %s20, 1
      %p69 = por %p67, %p68
      %p71 = scmp.ne.s32.totalorder %s54, %s70
      %p72 = scmp.eq.s32.totalorder %s20, 0
      %p73 = por %p71, %p72
      %s74 = ssub.s32 %s14, %s21
      %p75 = scmp.eq.s32.totalorder %s74, 0
      %s77 = sadd.s32 %s76, 1
      %s78 = scalar_select %p75, %s76, %s77
      %p81 = pneg %p75
      %p82 = scmp.eq.s32.totalorder %s14, 1
      %p83 = por %p81, %p82
      %p84 = scmp.ne.s32.totalorder %s76, %s79
      %p85 = scmp.eq.s32.totalorder %s14, 0
      %p86 = por %p84, %p85
      %p87 = scmp.ne.s32.totalorder %s76, %s79
      %p88 = scmp.eq.s32.totalorder %s19, 1
      %p89 = por %p87, %p88
      %p90 = scmp.ne.s32.totalorder %s79, %s80
      %p91 = scmp.eq.s32.totalorder %s19, 0
      %p92 = por %p90, %p91
      %p93 = scmp.ne.s32.totalorder %s79, %s80
      %p94 = scmp.eq.s32.totalorder %s20, 1
      %p95 = por %p93, %p94
      %p97 = scmp.ne.s32.totalorder %s80, %s96
      %p98 = scmp.eq.s32.totalorder %s20, 0
      %p99 = por %p97, %p98
      %s101 = sadd.s32 %s100, 1
      %p104 = scmp.eq.s32.totalorder %s14, 1
      %p105 = scmp.ne.s32.totalorder %s100, %s102
      %p106 = scmp.eq.s32.totalorder %s14, 0
      %p107 = por %p105, %p106
      %p108 = scmp.ne.s32.totalorder %s100, %s102
      %p109 = scmp.eq.s32.totalorder %s19, 1
      %p110 = por %p108, %p109
      %p111 = scmp.ne.s32.totalorder %s102, %s103
      %p112 = scmp.eq.s32.totalorder %s19, 0
      %p113 = por %p111, %p112
      %p114 = scmp.ne.s32.totalorder %s102, %s103
      %p115 = scmp.eq.s32.totalorder %s20, 1
      %p116 = por %p114, %p115
      %p118 = scmp.ne.s32.totalorder %s103, %s117
      %p119 = scmp.eq.s32.totalorder %s20, 0
      %p120 = por %p118, %p119
      %s122 = sadd.s32 %s121, 1
      %p125 = scmp.eq.s32.totalorder %s14, 1
      %p126 = scmp.ne.s32.totalorder %s121, %s123
      %p127 = scmp.eq.s32.totalorder %s14, 0
      %p128 = por %p126, %p127
      %p129 = scmp.ne.s32.totalorder %s121, %s123
      %p130 = scmp.eq.s32.totalorder %s19, 1
      %p131 = por %p129, %p130
      %p132 = scmp.ne.s32.totalorder %s123, %s124
      %p133 = scmp.eq.s32.totalorder %s19, 0
      %p134 = por %p132, %p133
      %p135 = scmp.ne.s32.totalorder %s123, %s124
      %p136 = scmp.eq.s32.totalorder %s20, 1
      %p137 = por %p135, %p136
      %p139 = scmp.ne.s32.totalorder %s124, %s138
      %p140 = scmp.eq.s32.totalorder %s20, 0
      %p141 = por %p139, %p140
      %s142 = ssub.s32 %s14, %s21
      %p143 = scmp.eq.s32.totalorder %s142, 0
      %s145 = sadd.s32 %s144, 1
      %s146 = scalar_select %p143, %s144, %s145
      %p149 = pneg %p143
      %p150 = scmp.eq.s32.totalorder %s14, 1
      %p151 = por %p149, %p150
      %p152 = scmp.ne.s32.totalorder %s144, %s147
      %p153 = scmp.eq.s32.totalorder %s14, 0
      %p154 = por %p152, %p153
      %p155 = scmp.ne.s32.totalorder %s144, %s147
      %p156 = scmp.eq.s32.totalorder %s19, 1
      %p157 = por %p155, %p156
      %p158 = scmp.ne.s32.totalorder %s147, %s148
      %p159 = scmp.eq.s32.totalorder %s19, 0
      %p160 = por %p158, %p159
      %p161 = scmp.ne.s32.totalorder %s147, %s148
      %p162 = scmp.eq.s32.totalorder %s20, 1
      %p163 = por %p161, %p162
      %p165 = scmp.ne.s32.totalorder %s148, %s164
      %p166 = scmp.eq.s32.totalorder %s20, 0
      %p167 = por %p165, %p166
      %p168 = scmp.le.s32.totalorder 1, %s14
      %p169 = scmp.lt.s32.totalorder %s14, 3
      %p170 = pnand %p168, %p169
      %p171 = pneg %p170
      // Predicated region
      $region9: #{mention_level_forward.1} parent=5 // pred_check
        _
      $region10: #{mention_level_forward.1} parent=5 // pred_check_branch
        %173 = sbr.rel (%p170) target = $region12
      $region11: #{mention_level_forward.1} parent=5 // pred_region
        %s174 = ssub.s32 %s14, 1
        // Predicated region
        $region13: #{mention_level_forward.1} parent=11 // pred_check
          %p175 = pneg %p113
        $region14: #{mention_level_forward.1} parent=11 // pred_check_branch
          %177 = sbr.rel (%p175) target = $region16
        $region15: #{mention_level_forward.1} parent=11 // pred_region
          _
        $region16: #{mention_level_forward.1} parent=11 // pred_fallthru
          _
        // Predicated region
        $region17: #{mention_level_forward.1} parent=11 // pred_check
          %p178 = pneg %p134
        $region18: #{mention_level_forward.1} parent=11 // pred_check_branch
          %180 = sbr.rel (%p178) target = $region20
        $region19: #{mention_level_forward.1} parent=11 // pred_region
          _
        $region20: #{mention_level_forward.1} parent=11 // pred_fallthru
          _
      $region12: #{mention_level_forward.1} parent=5 // pred_fallthru
        _
      %p181 = scmp.lt.s32.totalorder %s14, 2
      // Predicated region
      $region21: #{mention_level_forward.1} parent=5 // pred_check
        %p182 = pneg %p181
      $region22: #{mention_level_forward.1} parent=5 // pred_check_branch
        %184 = sbr.rel (%p182) target = $region24
      $region23: #{mention_level_forward.1} parent=5 // pred_region
        // Predicated region
        $region25: #{mention_level_forward.1} parent=23 // pred_check
          %p185 = pneg %p34
        $region26: #{mention_level_forward.1} parent=23 // pred_check_branch
          %187 = sbr.rel (%p185) target = $region28
        $region27: #{mention_level_forward.1} parent=23 // pred_region
          %s188 = smul.u32 16, %s14
          %p189 = scmp.lt.s32.totalorder %s188, 31
          %s190 = scalar_select %p189, %s188, 31
          %s191 = smul.addr %s190, 2
          %s192 = smul.addr %s191, 8
          %s193 = scalar_lea.vmem %s0, %s192
          %s194 = smul.u32 16, %s14
        $region28: #{mention_level_forward.1} parent=23 // pred_fallthru
          _
        // Predicated region
        $region29: #{mention_level_forward.1} parent=23 // pred_check
          %p195 = pneg %p60
        $region30: #{mention_level_forward.1} parent=23 // pred_check_branch
          %197 = sbr.rel (%p195) target = $region32
        $region31: #{mention_level_forward.1} parent=23 // pred_region
          %s198 = smul.u32 16, %s14
          %p199 = scmp.lt.s32.totalorder %s198, 31
          %s200 = scalar_select %p199, %s198, 31
          %s201 = smul.addr %s200, 2
          %s202 = smul.addr %s201, 8
          %s203 = scalar_lea.vmem %s1, %s202
          %s204 = smul.u32 16, %s14
        $region32: #{mention_level_forward.1} parent=23 // pred_fallthru
          _
        // Predicated region
        $region33: #{mention_level_forward.1} parent=23 // pred_check
          %p205 = pneg %p86
        $region34: #{mention_level_forward.1} parent=23 // pred_check_branch
          %207 = sbr.rel (%p205) target = $region36
        $region35: #{mention_level_forward.1} parent=23 // pred_region
          %s208 = smul.u32 16, %s14
          %p209 = scmp.lt.s32.totalorder %s208, 31
          %s210 = scalar_select %p209, %s208, 31
          %s211 = smul.addr %s210, 2
          %s212 = smul.addr %s211, 8
          %s213 = scalar_lea.vmem %s2, %s212
          %s214 = smul.u32 16, %s14
        $region36: #{mention_level_forward.1} parent=23 // pred_fallthru
          _
      $region24: #{mention_level_forward.1} parent=5 // pred_fallthru
        _
      %p215 = scmp.le.s32.totalorder 1, %s14
      %p216 = scmp.lt.s32.totalorder %s14, 3
      %p217 = pnand %p215, %p216
      %p218 = pneg %p217
      // Predicated region
      $region37: #{mention_level_forward.1} parent=5 // pred_check
        _
      $region38: #{mention_level_forward.1} parent=5 // pred_check_branch
        %220 = sbr.rel (%p217) target = $region40
      $region39: #{mention_level_forward.1} parent=5 // pred_region
        %s221 = ssub.s32 %s14, 1
        %s222 = smul.u32 16, %s19
        %p223 = scmp.lt.s32.totalorder %s222, 31
        %s224 = scalar_select %p223, %s222, 31
        %s225 = smul.addr %s224, 2
        %s226 = smul.addr %s225, 8
        %s227 = scalar_lea.vmem %s0, %s226
        %p228 = pneg %p40
        %p229 = pneg %p37
        %s230 = smul.u32 16, %s19
        %p231 = scmp.lt.s32.totalorder %s230, 31
        %s232 = scalar_select %p231, %s230, 31
        %s233 = smul.addr %s232, 2
        %s234 = smul.addr %s233, 8
        %s235 = scalar_lea.vmem %s1, %s234
        %p236 = pneg %p66
        %p237 = pneg %p63
        %s238 = smul.u32 16, %s19
        %p239 = scmp.lt.s32.totalorder %s238, 31
        %s240 = scalar_select %p239, %s238, 31
        %s241 = smul.addr %s240, 2
        %s242 = smul.addr %s241, 8
        %s243 = scalar_lea.vmem %s2, %s242
        %p244 = pneg %p92
        %p245 = pneg %p89
        %p246 = pneg %p113
        %p247 = pneg %p110
        %p248 = pneg %p134
        %p249 = pneg %p131
        %p250 = pneg %p160
        %p251 = pneg %p157
        %s252 = sand.u32 %s147, 1
        %s253 = scalar_lea.sflag [#allocation3], %s252
        %s254 = sand.u32 %s147, 1
        %s255 = smul.addr %s254, 128
        %s256 = scalar_lea.vmem [#allocation2], %s255
        %s257 = smul.u32 16, %s19
        %p258 = scmp.lt.s32.totalorder %s257, 31
        %s259 = scalar_select %p258, %s257, 31
        %s260 = smul.addr %s259, 2
        %s261 = smul.addr %s260, 8
        %s262 = scalar_lea.vmem %s0, %s261
        %s263 = smul.u32 16, %s19
        %s264 = smul.u32 16, %s19
        %p265 = scmp.lt.s32.totalorder %s264, 31
        %s266 = scalar_select %p265, %s264, 31
        %s267 = smul.addr %s266, 2
        %s268 = smul.addr %s267, 8
        %s269 = scalar_lea.vmem %s1, %s268
        %s270 = smul.u32 16, %s19
        %s271 = smul.u32 16, %s19
        %p272 = scmp.lt.s32.totalorder %s271, 31
        %s273 = scalar_select %p272, %s271, 31
        %s274 = smul.addr %s273, 2
        %s275 = smul.addr %s274, 8
        %s276 = scalar_lea.vmem %s2, %s275
        %s277 = smul.u32 16, %s19
        %s278 = smul.u32 16, %s19
        %v280 = vld [vmem:[%s4] sm:$0x1]
        %v281 = vld [vmem:[%s4 + $0x1] sm:$0x1]
        %v282 = vld [vmem:[%s4 + $0x2] sm:$0x1]
        %v283 = vld [vmem:[%s4 + $0x3] sm:$0x1]
        %v284 = vld [vmem:[%s262] sm:$0xff]
        %v285 = vld [vmem:[%s262 + $0x8] sm:$0xff]
        %v286 = vld [vmem:[%s262 + $0x10] sm:$0xff]
        %v287 = vld [vmem:[%s262 + $0x18] sm:$0xff]
        %v288 = vld [vmem:[%s262 + $0x20] sm:$0xff]
        %v289 = vld [vmem:[%s262 + $0x28] sm:$0xff]
        %v290 = vld [vmem:[%s262 + $0x30] sm:$0xff]
        %v291 = vld [vmem:[%s262 + $0x38] sm:$0xff]
        %v292 = vld [vmem:[%s262 + $0x40] sm:$0xff]
        %v293 = vld [vmem:[%s262 + $0x48] sm:$0xff]
        %v294 = vld [vmem:[%s262 + $0x50] sm:$0xff]
        %v295 = vld [vmem:[%s262 + $0x58] sm:$0xff]
        %v296 = vld [vmem:[%s262 + $0x60] sm:$0xff]
        %v297 = vld [vmem:[%s262 + $0x68] sm:$0xff]
        %v298 = vld [vmem:[%s262 + $0x70] sm:$0xff]
        %v299 = vld [vmem:[%s262 + $0x78] sm:$0xff]
        %v300 = vld [vmem:[%s262 + $0x80] sm:$0xff]
        %v301 = vld [vmem:[%s262 + $0x88] sm:$0xff]
        %v302 = vld [vmem:[%s262 + $0x90] sm:$0xff]
        %v303 = vld [vmem:[%s262 + $0x98] sm:$0xff]
        %v304 = vld [vmem:[%s262 + $0xa0] sm:$0xff]
        %v305 = vld [vmem:[%s262 + $0xa8] sm:$0xff]
        %v306 = vld [vmem:[%s262 + $0xb0] sm:$0xff]
        %v307 = vld [vmem:[%s262 + $0xb8] sm:$0xff]
        %v308 = vld [vmem:[%s262 + $0xc0] sm:$0xff]
        %v309 = vld [vmem:[%s262 + $0xc8] sm:$0xff]
        %v310 = vld [vmem:[%s262 + $0xd0] sm:$0xff]
        %v311 = vld [vmem:[%s262 + $0xd8] sm:$0xff]
        %v312 = vld [vmem:[%s262 + $0xe0] sm:$0xff]
        %v313 = vld [vmem:[%s262 + $0xe8] sm:$0xff]
        %v314 = vld [vmem:[%s262 + $0xf0] sm:$0xff]
        %v315 = vld [vmem:[%s262 + $0xf8] sm:$0xff]
        %v316 = vpack.c.bf16 %v286, %v284
        %v317 = vpack.c.bf16 %v287, %v285
        %v318 = vpack.c.bf16 %v290, %v288
        %v319 = vpack.c.bf16 %v291, %v289
        %v320 = vpack.c.bf16 %v294, %v292
        %v321 = vpack.c.bf16 %v295, %v293
        %v322 = vpack.c.bf16 %v298, %v296
        %v323 = vpack.c.bf16 %v299, %v297
        %v324 = vpack.c.bf16 %v302, %v300
        %v325 = vpack.c.bf16 %v303, %v301
        %v326 = vpack.c.bf16 %v306, %v304
        %v327 = vpack.c.bf16 %v307, %v305
        %v328 = vpack.c.bf16 %v310, %v308
        %v329 = vpack.c.bf16 %v311, %v309
        %v330 = vpack.c.bf16 %v314, %v312
        %v331 = vpack.c.bf16 %v315, %v313
        %v332 = vld [vmem:[%s3] sm:$0xf]
        %v333 = vld [vmem:[%s3 + $0x4] sm:$0xf]
        %v334 = vld [vmem:[%s3 + $0x8] sm:$0xf]
        %v335 = vld [vmem:[%s3 + $0xc] sm:$0xf]
        %v336 = vld [vmem:[%s3 + $0x10] sm:$0xf]
        %v337 = vld [vmem:[%s3 + $0x14] sm:$0xf]
        %v338 = vld [vmem:[%s3 + $0x18] sm:$0xf]
        %v339 = vld [vmem:[%s3 + $0x1c] sm:$0xf]
        %v340 = vld [vmem:[%s3 + $0x20] sm:$0xf]
        %v341 = vld [vmem:[%s3 + $0x24] sm:$0xf]
        %v342 = vld [vmem:[%s3 + $0x28] sm:$0xf]
        %v343 = vld [vmem:[%s3 + $0x2c] sm:$0xf]
        %v344 = vld [vmem:[%s3 + $0x30] sm:$0xf]
        %v345 = vld [vmem:[%s3 + $0x34] sm:$0xf]
        %v346 = vld [vmem:[%s3 + $0x38] sm:$0xf]
        %v347 = vld [vmem:[%s3 + $0x3c] sm:$0xf]
        %v348 = vld [vmem:[%s3 + $0x40] sm:$0xf]
        %v349 = vld [vmem:[%s3 + $0x44] sm:$0xf]
        %v350 = vld [vmem:[%s3 + $0x48] sm:$0xf]
        %v351 = vld [vmem:[%s3 + $0x4c] sm:$0xf]
        %v352 = vld [vmem:[%s3 + $0x50] sm:$0xf]
        %v353 = vld [vmem:[%s3 + $0x54] sm:$0xf]
        %v354 = vld [vmem:[%s3 + $0x58] sm:$0xf]
        %v355 = vld [vmem:[%s3 + $0x5c] sm:$0xf]
        %v356 = vld [vmem:[%s3 + $0x60] sm:$0xf]
        %v357 = vld [vmem:[%s3 + $0x64] sm:$0xf]
        %v358 = vld [vmem:[%s3 + $0x68] sm:$0xf]
        %v359 = vld [vmem:[%s3 + $0x6c] sm:$0xf]
        %v360 = vld [vmem:[%s3 + $0x70] sm:$0xf]
        %v361 = vld [vmem:[%s3 + $0x74] sm:$0xf]
        %v362 = vld [vmem:[%s3 + $0x78] sm:$0xf]
        %v363 = vld [vmem:[%s3 + $0x7c] sm:$0xf]
        %v364 = vld [vmem:[%s269] sm:$0xff]
        %v365 = vld [vmem:[%s269 + $0x8] sm:$0xff]
        %v366 = vld [vmem:[%s269 + $0x10] sm:$0xff]
        %v367 = vld [vmem:[%s269 + $0x18] sm:$0xff]
        %v368 = vld [vmem:[%s269 + $0x20] sm:$0xff]
        %v369 = vld [vmem:[%s269 + $0x28] sm:$0xff]
        %v370 = vld [vmem:[%s269 + $0x30] sm:$0xff]
        %v371 = vld [vmem:[%s269 + $0x38] sm:$0xff]
        %v372 = vld [vmem:[%s269 + $0x40] sm:$0xff]
        %v373 = vld [vmem:[%s269 + $0x48] sm:$0xff]
        %v374 = vld [vmem:[%s269 + $0x50] sm:$0xff]
        %v375 = vld [vmem:[%s269 + $0x58] sm:$0xff]
        %v376 = vld [vmem:[%s269 + $0x60] sm:$0xff]
        %v377 = vld [vmem:[%s269 + $0x68] sm:$0xff]
        %v378 = vld [vmem:[%s269 + $0x70] sm:$0xff]
        %v379 = vld [vmem:[%s269 + $0x78] sm:$0xff]
        %v380 = vld [vmem:[%s269 + $0x80] sm:$0xff]
        %v381 = vld [vmem:[%s269 + $0x88] sm:$0xff]
        %v382 = vld [vmem:[%s269 + $0x90] sm:$0xff]
        %v383 = vld [vmem:[%s269 + $0x98] sm:$0xff]
        %v384 = vld [vmem:[%s269 + $0xa0] sm:$0xff]
        %v385 = vld [vmem:[%s269 + $0xa8] sm:$0xff]
        %v386 = vld [vmem:[%s269 + $0xb0] sm:$0xff]
        %v387 = vld [vmem:[%s269 + $0xb8] sm:$0xff]
        %v388 = vld [vmem:[%s269 + $0xc0] sm:$0xff]
        %v389 = vld [vmem:[%s269 + $0xc8] sm:$0xff]
        %v390 = vld [vmem:[%s269 + $0xd0] sm:$0xff]
        %v391 = vld [vmem:[%s269 + $0xd8] sm:$0xff]
        %v392 = vld [vmem:[%s269 + $0xe0] sm:$0xff]
        %v393 = vld [vmem:[%s269 + $0xe8] sm:$0xff]
        %v394 = vld [vmem:[%s269 + $0xf0] sm:$0xff]
        %v395 = vld [vmem:[%s269 + $0xf8] sm:$0xff]
        %v396 = vpack.c.bf16 %v366, %v364
        %v397 = vpack.c.bf16 %v367, %v365
        %v398 = vpack.c.bf16 %v370, %v368
        %v399 = vpack.c.bf16 %v371, %v369
        %v400 = vpack.c.bf16 %v374, %v372
        %v401 = vpack.c.bf16 %v375, %v373
        %v402 = vpack.c.bf16 %v378, %v376
        %v403 = vpack.c.bf16 %v379, %v377
        %v404 = vpack.c.bf16 %v382, %v380
        %v405 = vpack.c.bf16 %v383, %v381
        %v406 = vpack.c.bf16 %v386, %v384
        %v407 = vpack.c.bf16 %v387, %v385
        %v408 = vpack.c.bf16 %v390, %v388
        %v409 = vpack.c.bf16 %v391, %v389
        %v410 = vpack.c.bf16 %v394, %v392
        %v411 = vpack.c.bf16 %v395, %v393
        %v412 = vld [vmem:[%s3 + $0x80] sm:$0xf]
        %v413 = vld [vmem:[%s3 + $0x84] sm:$0xf]
        %v414 = vld [vmem:[%s3 + $0x88] sm:$0xf]
        %v415 = vld [vmem:[%s3 + $0x8c] sm:$0xf]
        %v416 = vld [vmem:[%s3 + $0x90] sm:$0xf]
        %v417 = vld [vmem:[%s3 + $0x94] sm:$0xf]
        %v418 = vld [vmem:[%s3 + $0x98] sm:$0xf]
        %v419 = vld [vmem:[%s3 + $0x9c] sm:$0xf]
        %v420 = vld [vmem:[%s3 + $0xa0] sm:$0xf]
        %v421 = vld [vmem:[%s3 + $0xa4] sm:$0xf]
        %v422 = vld [vmem:[%s3 + $0xa8] sm:$0xf]
        %v423 = vld [vmem:[%s3 + $0xac] sm:$0xf]
        %v424 = vld [vmem:[%s3 + $0xb0] sm:$0xf]
        %v425 = vld [vmem:[%s3 + $0xb4] sm:$0xf]
        %v426 = vld [vmem:[%s3 + $0xb8] sm:$0xf]
        %v427 = vld [vmem:[%s3 + $0xbc] sm:$0xf]
        %v428 = vld [vmem:[%s3 + $0xc0] sm:$0xf]
        %v429 = vld [vmem:[%s3 + $0xc4] sm:$0xf]
        %v430 = vld [vmem:[%s3 + $0xc8] sm:$0xf]
        %v431 = vld [vmem:[%s3 + $0xcc] sm:$0xf]
        %v432 = vld [vmem:[%s3 + $0xd0] sm:$0xf]
        %v433 = vld [vmem:[%s3 + $0xd4] sm:$0xf]
        %v434 = vld [vmem:[%s3 + $0xd8] sm:$0xf]
        %v435 = vld [vmem:[%s3 + $0xdc] sm:$0xf]
        %v436 = vld [vmem:[%s3 + $0xe0] sm:$0xf]
        %v437 = vld [vmem:[%s3 + $0xe4] sm:$0xf]
        %v438 = vld [vmem:[%s3 + $0xe8] sm:$0xf]
        %v439 = vld [vmem:[%s3 + $0xec] sm:$0xf]
        %v440 = vld [vmem:[%s3 + $0xf0] sm:$0xf]
        %v441 = vld [vmem:[%s3 + $0xf4] sm:$0xf]
        %v442 = vld [vmem:[%s3 + $0xf8] sm:$0xf]
        %v443 = vld [vmem:[%s3 + $0xfc] sm:$0xf]
        %v476 = vunpack.c.l.b16 %v412
        %v477 = vunpack.c.l.b16 %v413
        %v478 = vunpack.c.l.b16 %v414
        %v479 = vunpack.c.l.b16 %v415
        %v480 = vunpack.c.l.b16 %v416
        %v481 = vunpack.c.l.b16 %v417
        %v482 = vunpack.c.l.b16 %v418
        %v483 = vunpack.c.l.b16 %v419
        %v484 = vunpack.c.l.b16 %v420
        %v485 = vunpack.c.l.b16 %v421
        %v486 = vunpack.c.l.b16 %v422
        %v487 = vunpack.c.l.b16 %v423
        %v488 = vunpack.c.l.b16 %v424
        %v489 = vunpack.c.l.b16 %v425
        %v490 = vunpack.c.l.b16 %v426
        %v491 = vunpack.c.l.b16 %v427
        %v492 = vunpack.c.l.b16 %v428
        %v493 = vunpack.c.l.b16 %v429
        %v494 = vunpack.c.l.b16 %v430
        %v495 = vunpack.c.l.b16 %v431
        %v496 = vunpack.c.l.b16 %v432
        %v497 = vunpack.c.l.b16 %v433
        %v498 = vunpack.c.l.b16 %v434
        %v499 = vunpack.c.l.b16 %v435
        %v500 = vunpack.c.l.b16 %v436
        %v501 = vunpack.c.l.b16 %v437
        %v502 = vunpack.c.l.b16 %v438
        %v503 = vunpack.c.l.b16 %v439
        %v504 = vunpack.c.l.b16 %v440
        %v505 = vunpack.c.l.b16 %v441
        %v506 = vunpack.c.l.b16 %v442
        %v507 = vunpack.c.l.b16 %v443
        %v508 = vpack.c.b16 %v477, %v476
        %v509 = vpack.c.b16 %v479, %v478
        %v510 = vpack.c.b16 %v481, %v480
        %v511 = vpack.c.b16 %v483, %v482
        %v512 = vpack.c.b16 %v485, %v484
        %v513 = vpack.c.b16 %v487, %v486
        %v514 = vpack.c.b16 %v489, %v488
        %v515 = vpack.c.b16 %v491, %v490
        %v516 = vpack.c.b16 %v493, %v492
        %v517 = vpack.c.b16 %v495, %v494
        %v518 = vpack.c.b16 %v497, %v496
        %v519 = vpack.c.b16 %v499, %v498
        %v520 = vpack.c.b16 %v501, %v500
        %v521 = vpack.c.b16 %v503, %v502
        %v522 = vpack.c.b16 %v505, %v504
        %v523 = vpack.c.b16 %v507, %v506
        %540 = vmatprep.subr.bf16.mxu0 0
        %541 = vmatpush1.bf16.msra.mxu0 %v515
        %542 = vmatprep.subr.bf16.mxu0 0
        %543 = vmatpush1.bf16.msra.mxu0 %v514
        %544 = vmatprep.subr.bf16.mxu0 0
        %545 = vmatpush1.bf16.msra.mxu0 %v513
        %546 = vmatprep.subr.bf16.mxu0 0
        %547 = vmatpush1.bf16.msra.mxu0 %v512
        %548 = vmatprep.subr.bf16.mxu0 0
        %549 = vmatpush1.bf16.msra.mxu0 %v511
        %550 = vmatprep.subr.bf16.mxu0 0
        %551 = vmatpush1.bf16.msra.mxu0 %v510
        %552 = vmatprep.subr.bf16.mxu0 0
        %553 = vmatpush1.bf16.msra.mxu0 %v509
        %554 = vmatprep.subr.bf16.mxu0 0
        %555 = vmatpush1.bf16.msra.mxu0 %v508
        %556 = vmatprep.subr.bf16.mxu0 0
        %557 = vmatpush2.bf16.msra.mxu0 %v523
        %558 = vmatprep.subr.bf16.mxu0 0
        %559 = vmatpush2.bf16.msra.mxu0 %v522
        %560 = vmatprep.subr.bf16.mxu0 0
        %561 = vmatpush2.bf16.msra.mxu0 %v521
        %562 = vmatprep.subr.bf16.mxu0 0
        %563 = vmatpush2.bf16.msra.mxu0 %v520
        %564 = vmatprep.subr.bf16.mxu0 0
        %565 = vmatpush2.bf16.msra.mxu0 %v519
        %566 = vmatprep.subr.bf16.mxu0 0
        %567 = vmatpush2.bf16.msra.mxu0 %v518
        %568 = vmatprep.subr.bf16.mxu0 0
        %569 = vmatpush2.bf16.msra.mxu0 %v517
        %570 = vmatprep.subr.bf16.mxu0 0
        %571 = vmatpush2.bf16.msra.mxu0 %v516
        %572 = vmatprep.mubr.bf16.mxu0 %v397
        %573 = vmatmul.mubr.bf16.gmra.mxu0 %v396
        %v574 = vpop.f32.mrf.mxu0
        %v575 = vadd.f32 0.0, %v574
        %v576 = vpop.f32.mrf.mxu0
        %v577 = vpop.f32.mrf.mxu0
        %v578 = vadd.f32 0.0, %v577
        %v579 = vpop.f32.mrf.mxu0
        %580 = vmatprep.mubr.bf16.mxu0 %v399
        %581 = vmatmul.mubr.bf16.gmra.mxu0 %v398
        %v582 = vpop.f32.mrf.mxu0
        %v583 = vadd.f32 0.0, %v582
        %v584 = vpop.f32.mrf.mxu0
        %v585 = vpop.f32.mrf.mxu0
        %v586 = vadd.f32 0.0, %v585
        %v587 = vpop.f32.mrf.mxu0
        %588 = vmatprep.mubr.bf16.mxu0 %v401
        %589 = vmatmul.mubr.bf16.gmra.mxu0 %v400
        %v590 = vpop.f32.mrf.mxu0
        %v591 = vadd.f32 0.0, %v590
        %v592 = vpop.f32.mrf.mxu0
        %v593 = vpop.f32.mrf.mxu0
        %v594 = vadd.f32 0.0, %v593
        %v595 = vpop.f32.mrf.mxu0
        %596 = vmatprep.mubr.bf16.mxu0 %v403
        %597 = vmatmul.mubr.bf16.gmra.mxu0 %v402
        %v598 = vpop.f32.mrf.mxu0
        %v599 = vadd.f32 0.0, %v598
        %v600 = vpop.f32.mrf.mxu0
        %v601 = vpop.f32.mrf.mxu0
        %v602 = vadd.f32 0.0, %v601
        %v603 = vpop.f32.mrf.mxu0
        %604 = vmatprep.mubr.bf16.mxu0 %v405
        %605 = vmatmul.mubr.bf16.gmra.mxu0 %v404
        %v606 = vpop.f32.mrf.mxu0
        %v607 = vadd.f32 0.0, %v606
        %v608 = vpop.f32.mrf.mxu0
        %v609 = vpop.f32.mrf.mxu0
        %v610 = vadd.f32 0.0, %v609
        %v611 = vpop.f32.mrf.mxu0
        %612 = vmatprep.mubr.bf16.mxu0 %v407
        %613 = vmatmul.mubr.bf16.gmra.mxu0 %v406
        %v614 = vpop.f32.mrf.mxu0
        %v615 = vadd.f32 0.0, %v614
        %v616 = vpop.f32.mrf.mxu0
        %v617 = vpop.f32.mrf.mxu0
        %v618 = vadd.f32 0.0, %v617
        %v619 = vpop.f32.mrf.mxu0
        %620 = vmatprep.mubr.bf16.mxu0 %v409
        %621 = vmatmul.mubr.bf16.gmra.mxu0 %v408
        %v622 = vpop.f32.mrf.mxu0
        %v623 = vadd.f32 0.0, %v622
        %v624 = vpop.f32.mrf.mxu0
        %v625 = vpop.f32.mrf.mxu0
        %v626 = vadd.f32 0.0, %v625
        %v627 = vpop.f32.mrf.mxu0
        %628 = vmatprep.mubr.bf16.mxu0 %v411
        %629 = vmatmul.mubr.bf16.gmra.mxu0 %v410
        %v630 = vpop.f32.mrf.mxu0
        %v631 = vadd.f32 0.0, %v630
        %v632 = vpop.f32.mrf.mxu0
        %v633 = vpop.f32.mrf.mxu0
        %v634 = vadd.f32 0.0, %v633
        %v635 = vpop.f32.mrf.mxu0
        %636 = vdwg.mxu0
        %v669 = vunpack.c.l.b16 %v332
        %v670 = vunpack.c.l.b16 %v333
        %v671 = vunpack.c.l.b16 %v334
        %v672 = vunpack.c.l.b16 %v335
        %v673 = vunpack.c.l.b16 %v336
        %v674 = vunpack.c.l.b16 %v337
        %v675 = vunpack.c.l.b16 %v338
        %v676 = vunpack.c.l.b16 %v339
        %v677 = vunpack.c.l.b16 %v340
        %v678 = vunpack.c.l.b16 %v341
        %v679 = vunpack.c.l.b16 %v342
        %v680 = vunpack.c.l.b16 %v343
        %v681 = vunpack.c.l.b16 %v344
        %v682 = vunpack.c.l.b16 %v345
        %v683 = vunpack.c.l.b16 %v346
        %v684 = vunpack.c.l.b16 %v347
        %v685 = vunpack.c.l.b16 %v348
        %v686 = vunpack.c.l.b16 %v349
        %v687 = vunpack.c.l.b16 %v350
        %v688 = vunpack.c.l.b16 %v351
        %v689 = vunpack.c.l.b16 %v352
        %v690 = vunpack.c.l.b16 %v353
        %v691 = vunpack.c.l.b16 %v354
        %v692 = vunpack.c.l.b16 %v355
        %v693 = vunpack.c.l.b16 %v356
        %v694 = vunpack.c.l.b16 %v357
        %v695 = vunpack.c.l.b16 %v358
        %v696 = vunpack.c.l.b16 %v359
        %v697 = vunpack.c.l.b16 %v360
        %v698 = vunpack.c.l.b16 %v361
        %v699 = vunpack.c.l.b16 %v362
        %v700 = vunpack.c.l.b16 %v363
        %v701 = vpack.c.b16 %v670, %v669
        %v702 = vpack.c.b16 %v672, %v671
        %v703 = vpack.c.b16 %v674, %v673
        %v704 = vpack.c.b16 %v676, %v675
        %v705 = vpack.c.b16 %v678, %v677
        %v706 = vpack.c.b16 %v680, %v679
        %v707 = vpack.c.b16 %v682, %v681
        %v708 = vpack.c.b16 %v684, %v683
        %v709 = vpack.c.b16 %v686, %v685
        %v710 = vpack.c.b16 %v688, %v687
        %v711 = vpack.c.b16 %v690, %v689
        %v712 = vpack.c.b16 %v692, %v691
        %v713 = vpack.c.b16 %v694, %v693
        %v714 = vpack.c.b16 %v696, %v695
        %v715 = vpack.c.b16 %v698, %v697
        %v716 = vpack.c.b16 %v700, %v699
        %733 = vmatprep.subr.bf16.mxu0 0
        %734 = vmatpush1.bf16.msra.mxu0 %v708
        %735 = vmatprep.subr.bf16.mxu0 0
        %736 = vmatpush1.bf16.msra.mxu0 %v707
        %737 = vmatprep.subr.bf16.mxu0 0
        %738 = vmatpush1.bf16.msra.mxu0 %v706
        %739 = vmatprep.subr.bf16.mxu0 0
        %740 = vmatpush1.bf16.msra.mxu0 %v705
        %741 = vmatprep.subr.bf16.mxu0 0
        %742 = vmatpush1.bf16.msra.mxu0 %v704
        %743 = vmatprep.subr.bf16.mxu0 0
        %744 = vmatpush1.bf16.msra.mxu0 %v703
        %745 = vmatprep.subr.bf16.mxu0 0
        %746 = vmatpush1.bf16.msra.mxu0 %v702
        %747 = vmatprep.subr.bf16.mxu0 0
        %748 = vmatpush1.bf16.msra.mxu0 %v701
        %749 = vmatprep.subr.bf16.mxu0 0
        %750 = vmatpush2.bf16.msra.mxu0 %v716
        %751 = vmatprep.subr.bf16.mxu0 0
        %752 = vmatpush2.bf16.msra.mxu0 %v715
        %753 = vmatprep.subr.bf16.mxu0 0
        %754 = vmatpush2.bf16.msra.mxu0 %v714
        %755 = vmatprep.subr.bf16.mxu0 0
        %756 = vmatpush2.bf16.msra.mxu0 %v713
        %757 = vmatprep.subr.bf16.mxu0 0
        %758 = vmatpush2.bf16.msra.mxu0 %v712
        %759 = vmatprep.subr.bf16.mxu0 0
        %760 = vmatpush2.bf16.msra.mxu0 %v711
        %761 = vmatprep.subr.bf16.mxu0 0
        %762 = vmatpush2.bf16.msra.mxu0 %v710
        %763 = vmatprep.subr.bf16.mxu0 0
        %764 = vmatpush2.bf16.msra.mxu0 %v709
        %765 = vmatprep.mubr.bf16.mxu0 %v317
        %766 = vmatmul.mubr.bf16.gmra.mxu0 %v316
        %v767 = vpop.f32.mrf.mxu0
        %v768 = vadd.f32 %v575, %v767
        %v769 = vpop.f32.mrf.mxu0
        %v770 = vpop.f32.mrf.mxu0
        %v771 = vadd.f32 %v578, %v770
        %v772 = vpop.f32.mrf.mxu0
        %773 = vmatprep.mubr.bf16.mxu0 %v319
        %774 = vmatmul.mubr.bf16.gmra.mxu0 %v318
        %v775 = vpop.f32.mrf.mxu0
        %v776 = vadd.f32 %v583, %v775
        %v777 = vpop.f32.mrf.mxu0
        %v778 = vpop.f32.mrf.mxu0
        %v779 = vadd.f32 %v586, %v778
        %v780 = vpop.f32.mrf.mxu0
        %781 = vmatprep.mubr.bf16.mxu0 %v321
        %782 = vmatmul.mubr.bf16.gmra.mxu0 %v320
        %v783 = vpop.f32.mrf.mxu0
        %v784 = vadd.f32 %v591, %v783
        %v785 = vpop.f32.mrf.mxu0
        %v786 = vpop.f32.mrf.mxu0
        %v787 = vadd.f32 %v594, %v786
        %v788 = vpop.f32.mrf.mxu0
        %789 = vmatprep.mubr.bf16.mxu0 %v323
        %790 = vmatmul.mubr.bf16.gmra.mxu0 %v322
        %v791 = vpop.f32.mrf.mxu0
        %v792 = vadd.f32 %v599, %v791
        %v793 = vpop.f32.mrf.mxu0
        %v794 = vpop.f32.mrf.mxu0
        %v795 = vadd.f32 %v602, %v794
        %v796 = vpop.f32.mrf.mxu0
        %797 = vmatprep.mubr.bf16.mxu0 %v325
        %798 = vmatmul.mubr.bf16.gmra.mxu0 %v324
        %v799 = vpop.f32.mrf.mxu0
        %v800 = vadd.f32 %v607, %v799
        %v801 = vpop.f32.mrf.mxu0
        %v802 = vpop.f32.mrf.mxu0
        %v803 = vadd.f32 %v610, %v802
        %v804 = vpop.f32.mrf.mxu0
        %805 = vmatprep.mubr.bf16.mxu0 %v327
        %806 = vmatmul.mubr.bf16.gmra.mxu0 %v326
        %v807 = vpop.f32.mrf.mxu0
        %v808 = vadd.f32 %v615, %v807
        %v809 = vpop.f32.mrf.mxu0
        %v810 = vpop.f32.mrf.mxu0
        %v811 = vadd.f32 %v618, %v810
        %v812 = vpop.f32.mrf.mxu0
        %813 = vmatprep.mubr.bf16.mxu0 %v329
        %814 = vmatmul.mubr.bf16.gmra.mxu0 %v328
        %v815 = vpop.f32.mrf.mxu0
        %v816 = vadd.f32 %v623, %v815
        %v817 = vpop.f32.mrf.mxu0
        %v818 = vpop.f32.mrf.mxu0
        %v819 = vadd.f32 %v626, %v818
        %v820 = vpop.f32.mrf.mxu0
        %821 = vmatprep.mubr.bf16.mxu0 %v331
        %822 = vmatmul.mubr.bf16.gmra.mxu0 %v330
        %v823 = vpop.f32.mrf.mxu0
        %v824 = vadd.f32 %v631, %v823
        %v825 = vpop.f32.mrf.mxu0
        %v826 = vpop.f32.mrf.mxu0
        %v827 = vadd.f32 %v634, %v826
        %v828 = vpop.f32.mrf.mxu0
        %829 = vdwg.mxu0
        %v830 = vld [vmem:[%s276] sm:$0xff]
        %v831 = vld [vmem:[%s276 + $0x8] sm:$0xff]
        %v832 = vld [vmem:[%s276 + $0x10] sm:$0xff]
        %v833 = vld [vmem:[%s276 + $0x18] sm:$0xff]
        %v834 = vld [vmem:[%s276 + $0x20] sm:$0xff]
        %v835 = vld [vmem:[%s276 + $0x28] sm:$0xff]
        %v836 = vld [vmem:[%s276 + $0x30] sm:$0xff]
        %v837 = vld [vmem:[%s276 + $0x38] sm:$0xff]
        %v838 = vld [vmem:[%s276 + $0x40] sm:$0xff]
        %v839 = vld [vmem:[%s276 + $0x48] sm:$0xff]
        %v840 = vld [vmem:[%s276 + $0x50] sm:$0xff]
        %v841 = vld [vmem:[%s276 + $0x58] sm:$0xff]
        %v842 = vld [vmem:[%s276 + $0x60] sm:$0xff]
        %v843 = vld [vmem:[%s276 + $0x68] sm:$0xff]
        %v844 = vld [vmem:[%s276 + $0x70] sm:$0xff]
        %v845 = vld [vmem:[%s276 + $0x78] sm:$0xff]
        %v846 = vld [vmem:[%s276 + $0x80] sm:$0xff]
        %v847 = vld [vmem:[%s276 + $0x88] sm:$0xff]
        %v848 = vld [vmem:[%s276 + $0x90] sm:$0xff]
        %v849 = vld [vmem:[%s276 + $0x98] sm:$0xff]
        %v850 = vld [vmem:[%s276 + $0xa0] sm:$0xff]
        %v851 = vld [vmem:[%s276 + $0xa8] sm:$0xff]
        %v852 = vld [vmem:[%s276 + $0xb0] sm:$0xff]
        %v853 = vld [vmem:[%s276 + $0xb8] sm:$0xff]
        %v854 = vld [vmem:[%s276 + $0xc0] sm:$0xff]
        %v855 = vld [vmem:[%s276 + $0xc8] sm:$0xff]
        %v856 = vld [vmem:[%s276 + $0xd0] sm:$0xff]
        %v857 = vld [vmem:[%s276 + $0xd8] sm:$0xff]
        %v858 = vld [vmem:[%s276 + $0xe0] sm:$0xff]
        %v859 = vld [vmem:[%s276 + $0xe8] sm:$0xff]
        %v860 = vld [vmem:[%s276 + $0xf0] sm:$0xff]
        %v861 = vld [vmem:[%s276 + $0xf8] sm:$0xff]
        %v862 = vpack.c.bf16 %v832, %v830
        %v863 = vpack.c.bf16 %v833, %v831
        %v864 = vpack.c.bf16 %v836, %v834
        %v865 = vpack.c.bf16 %v837, %v835
        %v866 = vpack.c.bf16 %v840, %v838
        %v867 = vpack.c.bf16 %v841, %v839
        %v868 = vpack.c.bf16 %v844, %v842
        %v869 = vpack.c.bf16 %v845, %v843
        %v870 = vpack.c.bf16 %v848, %v846
        %v871 = vpack.c.bf16 %v849, %v847
        %v872 = vpack.c.bf16 %v852, %v850
        %v873 = vpack.c.bf16 %v853, %v851
        %v874 = vpack.c.bf16 %v856, %v854
        %v875 = vpack.c.bf16 %v857, %v855
        %v876 = vpack.c.bf16 %v860, %v858
        %v877 = vpack.c.bf16 %v861, %v859
        %v878 = vld [vmem:[%s3 + $0x100] sm:$0xf]
        %v879 = vld [vmem:[%s3 + $0x104] sm:$0xf]
        %v880 = vld [vmem:[%s3 + $0x108] sm:$0xf]
        %v881 = vld [vmem:[%s3 + $0x10c] sm:$0xf]
        %v882 = vld [vmem:[%s3 + $0x110] sm:$0xf]
        %v883 = vld [vmem:[%s3 + $0x114] sm:$0xf]
        %v884 = vld [vmem:[%s3 + $0x118] sm:$0xf]
        %v885 = vld [vmem:[%s3 + $0x11c] sm:$0xf]
        %v886 = vld [vmem:[%s3 + $0x120] sm:$0xf]
        %v887 = vld [vmem:[%s3 + $0x124] sm:$0xf]
        %v888 = vld [vmem:[%s3 + $0x128] sm:$0xf]
        %v889 = vld [vmem:[%s3 + $0x12c] sm:$0xf]
        %v890 = vld [vmem:[%s3 + $0x130] sm:$0xf]
        %v891 = vld [vmem:[%s3 + $0x134] sm:$0xf]
        %v892 = vld [vmem:[%s3 + $0x138] sm:$0xf]
        %v893 = vld [vmem:[%s3 + $0x13c] sm:$0xf]
        %v894 = vld [vmem:[%s3 + $0x140] sm:$0xf]
        %v895 = vld [vmem:[%s3 + $0x144] sm:$0xf]
        %v896 = vld [vmem:[%s3 + $0x148] sm:$0xf]
        %v897 = vld [vmem:[%s3 + $0x14c] sm:$0xf]
        %v898 = vld [vmem:[%s3 + $0x150] sm:$0xf]
        %v899 = vld [vmem:[%s3 + $0x154] sm:$0xf]
        %v900 = vld [vmem:[%s3 + $0x158] sm:$0xf]
        %v901 = vld [vmem:[%s3 + $0x15c] sm:$0xf]
        %v902 = vld [vmem:[%s3 + $0x160] sm:$0xf]
        %v903 = vld [vmem:[%s3 + $0x164] sm:$0xf]
        %v904 = vld [vmem:[%s3 + $0x168] sm:$0xf]
        %v905 = vld [vmem:[%s3 + $0x16c] sm:$0xf]
        %v906 = vld [vmem:[%s3 + $0x170] sm:$0xf]
        %v907 = vld [vmem:[%s3 + $0x174] sm:$0xf]
        %v908 = vld [vmem:[%s3 + $0x178] sm:$0xf]
        %v909 = vld [vmem:[%s3 + $0x17c] sm:$0xf]
        %v942 = vunpack.c.l.b16 %v878
        %v943 = vunpack.c.l.b16 %v879
        %v944 = vunpack.c.l.b16 %v880
        %v945 = vunpack.c.l.b16 %v881
        %v946 = vunpack.c.l.b16 %v882
        %v947 = vunpack.c.l.b16 %v883
        %v948 = vunpack.c.l.b16 %v884
        %v949 = vunpack.c.l.b16 %v885
        %v950 = vunpack.c.l.b16 %v886
        %v951 = vunpack.c.l.b16 %v887
        %v952 = vunpack.c.l.b16 %v888
        %v953 = vunpack.c.l.b16 %v889
        %v954 = vunpack.c.l.b16 %v890
        %v955 = vunpack.c.l.b16 %v891
        %v956 = vunpack.c.l.b16 %v892
        %v957 = vunpack.c.l.b16 %v893
        %v958 = vunpack.c.l.b16 %v894
        %v959 = vunpack.c.l.b16 %v895
        %v960 = vunpack.c.l.b16 %v896
        %v961 = vunpack.c.l.b16 %v897
        %v962 = vunpack.c.l.b16 %v898
        %v963 = vunpack.c.l.b16 %v899
        %v964 = vunpack.c.l.b16 %v900
        %v965 = vunpack.c.l.b16 %v901
        %v966 = vunpack.c.l.b16 %v902
        %v967 = vunpack.c.l.b16 %v903
        %v968 = vunpack.c.l.b16 %v904
        %v969 = vunpack.c.l.b16 %v905
        %v970 = vunpack.c.l.b16 %v906
        %v971 = vunpack.c.l.b16 %v907
        %v972 = vunpack.c.l.b16 %v908
        %v973 = vunpack.c.l.b16 %v909
        %v974 = vpack.c.b16 %v943, %v942
        %v975 = vpack.c.b16 %v945, %v944
        %v976 = vpack.c.b16 %v947, %v946
        %v977 = vpack.c.b16 %v949, %v948
        %v978 = vpack.c.b16 %v951, %v950
        %v979 = vpack.c.b16 %v953, %v952
        %v980 = vpack.c.b16 %v955, %v954
        %v981 = vpack.c.b16 %v957, %v956
        %v982 = vpack.c.b16 %v959, %v958
        %v983 = vpack.c.b16 %v961, %v960
        %v984 = vpack.c.b16 %v963, %v962
        %v985 = vpack.c.b16 %v965, %v964
        %v986 = vpack.c.b16 %v967, %v966
        %v987 = vpack.c.b16 %v969, %v968
        %v988 = vpack.c.b16 %v971, %v970
        %v989 = vpack.c.b16 %v973, %v972
        %1006 = vmatprep.subr.bf16.mxu0 0
        %1007 = vmatpush1.bf16.msra.mxu0 %v981
        %1008 = vmatprep.subr.bf16.mxu0 0
        %1009 = vmatpush1.bf16.msra.mxu0 %v980
        %1010 = vmatprep.subr.bf16.mxu0 0
        %1011 = vmatpush1.bf16.msra.mxu0 %v979
        %1012 = vmatprep.subr.bf16.mxu0 0
        %1013 = vmatpush1.bf16.msra.mxu0 %v978
        %1014 = vmatprep.subr.bf16.mxu0 0
        %1015 = vmatpush1.bf16.msra.mxu0 %v977
        %1016 = vmatprep.subr.bf16.mxu0 0
        %1017 = vmatpush1.bf16.msra.mxu0 %v976
        %1018 = vmatprep.subr.bf16.mxu0 0
        %1019 = vmatpush1.bf16.msra.mxu0 %v975
        %1020 = vmatprep.subr.bf16.mxu0 0
        %1021 = vmatpush1.bf16.msra.mxu0 %v974
        %1022 = vmatprep.subr.bf16.mxu0 0
        %1023 = vmatpush2.bf16.msra.mxu0 %v989
        %1024 = vmatprep.subr.bf16.mxu0 0
        %1025 = vmatpush2.bf16.msra.mxu0 %v988
        %1026 = vmatprep.subr.bf16.mxu0 0
        %1027 = vmatpush2.bf16.msra.mxu0 %v987
        %1028 = vmatprep.subr.bf16.mxu0 0
        %1029 = vmatpush2.bf16.msra.mxu0 %v986
        %1030 = vmatprep.subr.bf16.mxu0 0
        %1031 = vmatpush2.bf16.msra.mxu0 %v985
        %1032 = vmatprep.subr.bf16.mxu0 0
        %1033 = vmatpush2.bf16.msra.mxu0 %v984
        %1034 = vmatprep.subr.bf16.mxu0 0
        %1035 = vmatpush2.bf16.msra.mxu0 %v983
        %1036 = vmatprep.subr.bf16.mxu0 0
        %1037 = vmatpush2.bf16.msra.mxu0 %v982
        %1038 = vmatprep.mubr.bf16.mxu0 %v863
        %1039 = vmatmul.mubr.bf16.gmra.mxu0 %v862
        %v1040 = vpop.f32.mrf.mxu0
        %v1041 = vadd.f32 0.0, %v1040
        %v1042 = vpop.f32.mrf.mxu0
        %v1043 = vpop.f32.mrf.mxu0
        %v1044 = vadd.f32 0.0, %v1043
        %v1045 = vpop.f32.mrf.mxu0
        %1046 = vmatprep.mubr.bf16.mxu0 %v865
        %1047 = vmatmul.mubr.bf16.gmra.mxu0 %v864
        %v1048 = vpop.f32.mrf.mxu0
        %v1049 = vadd.f32 0.0, %v1048
        %v1050 = vpop.f32.mrf.mxu0
        %v1051 = vpop.f32.mrf.mxu0
        %v1052 = vadd.f32 0.0, %v1051
        %v1053 = vpop.f32.mrf.mxu0
        %1054 = vmatprep.mubr.bf16.mxu0 %v867
        %1055 = vmatmul.mubr.bf16.gmra.mxu0 %v866
        %v1056 = vpop.f32.mrf.mxu0
        %v1057 = vadd.f32 0.0, %v1056
        %v1058 = vpop.f32.mrf.mxu0
        %v1059 = vpop.f32.mrf.mxu0
        %v1060 = vadd.f32 0.0, %v1059
        %v1061 = vpop.f32.mrf.mxu0
        %1062 = vmatprep.mubr.bf16.mxu0 %v869
        %1063 = vmatmul.mubr.bf16.gmra.mxu0 %v868
        %v1064 = vpop.f32.mrf.mxu0
        %v1065 = vadd.f32 0.0, %v1064
        %v1066 = vpop.f32.mrf.mxu0
        %v1067 = vpop.f32.mrf.mxu0
        %v1068 = vadd.f32 0.0, %v1067
        %v1069 = vpop.f32.mrf.mxu0
        %1070 = vmatprep.mubr.bf16.mxu0 %v871
        %1071 = vmatmul.mubr.bf16.gmra.mxu0 %v870
        %v1072 = vpop.f32.mrf.mxu0
        %v1073 = vadd.f32 0.0, %v1072
        %v1074 = vpop.f32.mrf.mxu0
        %v1075 = vpop.f32.mrf.mxu0
        %v1076 = vadd.f32 0.0, %v1075
        %v1077 = vpop.f32.mrf.mxu0
        %1078 = vmatprep.mubr.bf16.mxu0 %v873
        %1079 = vmatmul.mubr.bf16.gmra.mxu0 %v872
        %v1080 = vpop.f32.mrf.mxu0
        %v1081 = vadd.f32 0.0, %v1080
        %v1082 = vpop.f32.mrf.mxu0
        %v1083 = vpop.f32.mrf.mxu0
        %v1084 = vadd.f32 0.0, %v1083
        %v1085 = vpop.f32.mrf.mxu0
        %1086 = vmatprep.mubr.bf16.mxu0 %v875
        %1087 = vmatmul.mubr.bf16.gmra.mxu0 %v874
        %v1088 = vpop.f32.mrf.mxu0
        %v1089 = vadd.f32 0.0, %v1088
        %v1090 = vpop.f32.mrf.mxu0
        %v1091 = vpop.f32.mrf.mxu0
        %v1092 = vadd.f32 0.0, %v1091
        %v1093 = vpop.f32.mrf.mxu0
        %1094 = vmatprep.mubr.bf16.mxu0 %v877
        %1095 = vmatmul.mubr.bf16.gmra.mxu0 %v876
        %v1096 = vpop.f32.mrf.mxu0
        %v1097 = vadd.f32 0.0, %v1096
        %v1098 = vpop.f32.mrf.mxu0
        %v1099 = vpop.f32.mrf.mxu0
        %v1100 = vadd.f32 0.0, %v1099
        %v1101 = vpop.f32.mrf.mxu0
        %1102 = vdwg.mxu0
        %v1103 = vadd.f32 %v768, %v1041
        %v1104 = vadd.f32 %v771, %v1044
        %v1105 = vadd.f32 %v776, %v1049
        %v1106 = vadd.f32 %v779, %v1052
        %v1107 = vadd.f32 %v784, %v1057
        %v1108 = vadd.f32 %v787, %v1060
        %v1109 = vadd.f32 %v792, %v1065
        %v1110 = vadd.f32 %v795, %v1068
        %v1111 = vadd.f32 %v800, %v1073
        %v1112 = vadd.f32 %v803, %v1076
        %v1113 = vadd.f32 %v808, %v1081
        %v1114 = vadd.f32 %v811, %v1084
        %v1115 = vadd.f32 %v816, %v1089
        %v1116 = vadd.f32 %v819, %v1092
        %v1117 = vadd.f32 %v824, %v1097
        %v1118 = vadd.f32 %v827, %v1100
        %v1119 = vlaneseq
        %v1120 = vshrl.u32 %v1119, 7
        %v1121 = vsub.s32 0, %v1120
        %v1122 = vrot.slane %v280, %v1121
        %v1123 = vadd.f32 %v1103, %v1122
        %v1124 = vadd.f32 %v1104, %v1122
        %v1125 = vadd.f32 %v1105, %v1122
        %v1126 = vadd.f32 %v1106, %v1122
        %v1127 = vadd.f32 %v1107, %v1122
        %v1128 = vadd.f32 %v1108, %v1122
        %v1129 = vadd.f32 %v1109, %v1122
        %v1130 = vadd.f32 %v1110, %v1122
        %v1131 = vadd.f32 %v1111, %v1122
        %v1132 = vadd.f32 %v1112, %v1122
        %v1133 = vadd.f32 %v1113, %v1122
        %v1134 = vadd.f32 %v1114, %v1122
        %v1135 = vadd.f32 %v1115, %v1122
        %v1136 = vadd.f32 %v1116, %v1122
        %v1137 = vadd.f32 %v1117, %v1122
        %v1138 = vadd.f32 %v1118, %v1122
        %v1139 = vmax.f32 %v1123, 0.0
        %v1140 = vmax.f32 %v1124, 0.0
        %v1141 = vmax.f32 %v1125, 0.0
        %v1142 = vmax.f32 %v1126, 0.0
        %v1143 = vmax.f32 %v1127, 0.0
        %v1144 = vmax.f32 %v1128, 0.0
        %v1145 = vmax.f32 %v1129, 0.0
        %v1146 = vmax.f32 %v1130, 0.0
        %v1147 = vmax.f32 %v1131, 0.0
        %v1148 = vmax.f32 %v1132, 0.0
        %v1149 = vmax.f32 %v1133, 0.0
        %v1150 = vmax.f32 %v1134, 0.0
        %v1151 = vmax.f32 %v1135, 0.0
        %v1152 = vmax.f32 %v1136, 0.0
        %v1153 = vmax.f32 %v1137, 0.0
        %v1154 = vmax.f32 %v1138, 0.0
        %v1155 = vpack.c.bf16 %v1140, %v1139
        %v1156 = vpack.c.bf16 %v1142, %v1141
        %v1157 = vpack.c.bf16 %v1144, %v1143
        %v1158 = vpack.c.bf16 %v1146, %v1145
        %v1159 = vpack.c.bf16 %v1148, %v1147
        %v1160 = vpack.c.bf16 %v1150, %v1149
        %v1161 = vpack.c.bf16 %v1152, %v1151
        %v1162 = vpack.c.bf16 %v1154, %v1153
        %v1163 = vld [vmem:[%s3 + $0x180] sm:$0xf]
        %v1164 = vld [vmem:[%s3 + $0x184] sm:$0xf]
        %v1165 = vld [vmem:[%s3 + $0x188] sm:$0xf]
        %v1166 = vld [vmem:[%s3 + $0x18c] sm:$0xf]
        %v1167 = vld [vmem:[%s3 + $0x190] sm:$0xf]
        %v1168 = vld [vmem:[%s3 + $0x194] sm:$0xf]
        %v1169 = vld [vmem:[%s3 + $0x198] sm:$0xf]
        %v1170 = vld [vmem:[%s3 + $0x19c] sm:$0xf]
        %v1171 = vld [vmem:[%s3 + $0x1a0] sm:$0xf]
        %v1172 = vld [vmem:[%s3 + $0x1a4] sm:$0xf]
        %v1173 = vld [vmem:[%s3 + $0x1a8] sm:$0xf]
        %v1174 = vld [vmem:[%s3 + $0x1ac] sm:$0xf]
        %v1175 = vld [vmem:[%s3 + $0x1b0] sm:$0xf]
        %v1176 = vld [vmem:[%s3 + $0x1b4] sm:$0xf]
        %v1177 = vld [vmem:[%s3 + $0x1b8] sm:$0xf]
        %v1178 = vld [vmem:[%s3 + $0x1bc] sm:$0xf]
        %v1179 = vlaneseq
        %v1180 = vshrl.u32 %v1179, 7
        %v1181 = vsub.s32 0, %v1180
        %v1182 = vrot.slane %v281, %v1181
        %v1199 = vunpack.c.l.b16 %v1163
        %v1200 = vunpack.c.l.b16 %v1164
        %v1201 = vunpack.c.l.b16 %v1165
        %v1202 = vunpack.c.l.b16 %v1166
        %v1203 = vunpack.c.l.b16 %v1167
        %v1204 = vunpack.c.l.b16 %v1168
        %v1205 = vunpack.c.l.b16 %v1169
        %v1206 = vunpack.c.l.b16 %v1170
        %v1207 = vunpack.c.l.b16 %v1171
        %v1208 = vunpack.c.l.b16 %v1172
        %v1209 = vunpack.c.l.b16 %v1173
        %v1210 = vunpack.c.l.b16 %v1174
        %v1211 = vunpack.c.l.b16 %v1175
        %v1212 = vunpack.c.l.b16 %v1176
        %v1213 = vunpack.c.l.b16 %v1177
        %v1214 = vunpack.c.l.b16 %v1178
        %v1215 = vpack.c.b16 %v1200, %v1199
        %v1216 = vpack.c.b16 %v1202, %v1201
        %v1217 = vpack.c.b16 %v1204, %v1203
        %v1218 = vpack.c.b16 %v1206, %v1205
        %v1219 = vpack.c.b16 %v1208, %v1207
        %v1220 = vpack.c.b16 %v1210, %v1209
        %v1221 = vpack.c.b16 %v1212, %v1211
        %v1222 = vpack.c.b16 %v1214, %v1213
        %1231 = vmatprep.subr.bf16.mxu0 0
        %1232 = vmatpush1.bf16.msra.mxu0 %v1222
        %1233 = vmatprep.subr.bf16.mxu0 0
        %1234 = vmatpush1.bf16.msra.mxu0 %v1221
        %1235 = vmatprep.subr.bf16.mxu0 0
        %1236 = vmatpush1.bf16.msra.mxu0 %v1220
        %1237 = vmatprep.subr.bf16.mxu0 0
        %1238 = vmatpush1.bf16.msra.mxu0 %v1219
        %1239 = vmatprep.subr.bf16.mxu0 0
        %1240 = vmatpush1.bf16.msra.mxu0 %v1218
        %1241 = vmatprep.subr.bf16.mxu0 0
        %1242 = vmatpush1.bf16.msra.mxu0 %v1217
        %1243 = vmatprep.subr.bf16.mxu0 0
        %1244 = vmatpush1.bf16.msra.mxu0 %v1216
        %1245 = vmatprep.subr.bf16.mxu0 0
        %1246 = vmatpush1.bf16.msra.mxu0 %v1215
        %1247 = vmatprep.subr.bf16.mxu0 0
        %1248 = vmatpush2.bf16.msra.mxu0 0
        %1249 = vmatprep.subr.bf16.mxu0 0
        %1250 = vmatpush2.bf16.msra.mxu0 0
        %1251 = vmatprep.subr.bf16.mxu0 0
        %1252 = vmatpush2.bf16.msra.mxu0 0
        %1253 = vmatprep.subr.bf16.mxu0 0
        %1254 = vmatpush2.bf16.msra.mxu0 0
        %1255 = vmatprep.subr.bf16.mxu0 0
        %1256 = vmatpush2.bf16.msra.mxu0 0
        %1257 = vmatprep.subr.bf16.mxu0 0
        %1258 = vmatpush2.bf16.msra.mxu0 0
        %1259 = vmatprep.subr.bf16.mxu0 0
        %1260 = vmatpush2.bf16.msra.mxu0 0
        %1261 = vmatprep.subr.bf16.mxu0 0
        %1262 = vmatpush2.bf16.msra.mxu0 0
        %1263 = vmatprep.mubr.bf16.mxu0 0
        %1264 = vmatmul.mubr.bf16.gmra.mxu0 %v1155
        %v1265 = vpop.f32.mrf.mxu0
        %v1266 = vadd.f32 %v1182, %v1265
        %v1267 = vpop.f32.mrf.mxu0
        %v1268 = vpop.f32.mrf.mxu0
        %v1269 = vadd.f32 %v1182, %v1268
        %v1270 = vpop.f32.mrf.mxu0
        %1271 = vmatprep.mubr.bf16.mxu0 0
        %1272 = vmatmul.mubr.bf16.gmra.mxu0 %v1156
        %v1273 = vpop.f32.mrf.mxu0
        %v1274 = vadd.f32 %v1182, %v1273
        %v1275 = vpop.f32.mrf.mxu0
        %v1276 = vpop.f32.mrf.mxu0
        %v1277 = vadd.f32 %v1182, %v1276
        %v1278 = vpop.f32.mrf.mxu0
        %1279 = vmatprep.mubr.bf16.mxu0 0
        %1280 = vmatmul.mubr.bf16.gmra.mxu0 %v1157
        %v1281 = vpop.f32.mrf.mxu0
        %v1282 = vadd.f32 %v1182, %v1281
        %v1283 = vpop.f32.mrf.mxu0
        %v1284 = vpop.f32.mrf.mxu0
        %v1285 = vadd.f32 %v1182, %v1284
        %v1286 = vpop.f32.mrf.mxu0
        %1287 = vmatprep.mubr.bf16.mxu0 0
        %1288 = vmatmul.mubr.bf16.gmra.mxu0 %v1158
        %v1289 = vpop.f32.mrf.mxu0
        %v1290 = vadd.f32 %v1182, %v1289
        %v1291 = vpop.f32.mrf.mxu0
        %v1292 = vpop.f32.mrf.mxu0
        %v1293 = vadd.f32 %v1182, %v1292
        %v1294 = vpop.f32.mrf.mxu0
        %1295 = vmatprep.mubr.bf16.mxu0 0
        %1296 = vmatmul.mubr.bf16.gmra.mxu0 %v1159
        %v1297 = vpop.f32.mrf.mxu0
        %v1298 = vadd.f32 %v1182, %v1297
        %v1299 = vpop.f32.mrf.mxu0
        %v1300 = vpop.f32.mrf.mxu0
        %v1301 = vadd.f32 %v1182, %v1300
        %v1302 = vpop.f32.mrf.mxu0
        %1303 = vmatprep.mubr.bf16.mxu0 0
        %1304 = vmatmul.mubr.bf16.gmra.mxu0 %v1160
        %v1305 = vpop.f32.mrf.mxu0
        %v1306 = vadd.f32 %v1182, %v1305
        %v1307 = vpop.f32.mrf.mxu0
        %v1308 = vpop.f32.mrf.mxu0
        %v1309 = vadd.f32 %v1182, %v1308
        %v1310 = vpop.f32.mrf.mxu0
        %1311 = vmatprep.mubr.bf16.mxu0 0
        %1312 = vmatmul.mubr.bf16.gmra.mxu0 %v1161
        %v1313 = vpop.f32.mrf.mxu0
        %v1314 = vadd.f32 %v1182, %v1313
        %v1315 = vpop.f32.mrf.mxu0
        %v1316 = vpop.f32.mrf.mxu0
        %v1317 = vadd.f32 %v1182, %v1316
        %v1318 = vpop.f32.mrf.mxu0
        %1319 = vmatprep.mubr.bf16.mxu0 0
        %1320 = vmatmul.mubr.bf16.gmra.mxu0 %v1162
        %v1321 = vpop.f32.mrf.mxu0
        %v1322 = vadd.f32 %v1182, %v1321
        %v1323 = vpop.f32.mrf.mxu0
        %v1324 = vpop.f32.mrf.mxu0
        %v1325 = vadd.f32 %v1182, %v1324
        %v1326 = vpop.f32.mrf.mxu0
        %1327 = vdwg.mxu0
        %1328 = vrot.lane.b32.xlu0 %v1266, 1
        %v1329 = vpop.permute.xlu0 %1328
        %1330 = vrot.lane.b32.xlu0 %v1269, 1
        %v1331 = vpop.permute.xlu0 %1330
        %1332 = vrot.lane.b32.xlu0 %v1274, 1
        %v1333 = vpop.permute.xlu0 %1332
        %1334 = vrot.lane.b32.xlu0 %v1277, 1
        %v1335 = vpop.permute.xlu0 %1334
        %1336 = vrot.lane.b32.xlu0 %v1282, 1
        %v1337 = vpop.permute.xlu0 %1336
        %1338 = vrot.lane.b32.xlu0 %v1285, 1
        %v1339 = vpop.permute.xlu0 %1338
        %1340 = vrot.lane.b32.xlu0 %v1290, 1
        %v1341 = vpop.permute.xlu0 %1340
        %1342 = vrot.lane.b32.xlu0 %v1293, 1
        %v1343 = vpop.permute.xlu0 %1342
        %1344 = vrot.lane.b32.xlu0 %v1298, 1
        %v1345 = vpop.permute.xlu0 %1344
        %1346 = vrot.lane.b32.xlu0 %v1301, 1
        %v1347 = vpop.permute.xlu0 %1346
        %1348 = vrot.lane.b32.xlu0 %v1306, 1
        %v1349 = vpop.permute.xlu0 %1348
        %1350 = vrot.lane.b32.xlu0 %v1309, 1
        %v1351 = vpop.permute.xlu0 %1350
        %1352 = vrot.lane.b32.xlu0 %v1314, 1
        %v1353 = vpop.permute.xlu0 %1352
        %1354 = vrot.lane.b32.xlu0 %v1317, 1
        %v1355 = vpop.permute.xlu0 %1354
        %1356 = vrot.lane.b32.xlu0 %v1322, 1
        %v1357 = vpop.permute.xlu0 %1356
        %1358 = vrot.lane.b32.xlu0 %v1325, 1
        %v1359 = vpop.permute.xlu0 %1358
        %v1360 = vmax.f32 %v1266, %v1329
        %v1361 = vmax.f32 %v1269, %v1331
        %v1362 = vmax.f32 %v1274, %v1333
        %v1363 = vmax.f32 %v1277, %v1335
        %v1364 = vmax.f32 %v1282, %v1337
        %v1365 = vmax.f32 %v1285, %v1339
        %v1366 = vmax.f32 %v1290, %v1341
        %v1367 = vmax.f32 %v1293, %v1343
        %v1368 = vmax.f32 %v1298, %v1345
        %v1369 = vmax.f32 %v1301, %v1347
        %v1370 = vmax.f32 %v1306, %v1349
        %v1371 = vmax.f32 %v1309, %v1351
        %v1372 = vmax.f32 %v1314, %v1353
        %v1373 = vmax.f32 %v1317, %v1355
        %v1374 = vmax.f32 %v1322, %v1357
        %v1375 = vmax.f32 %v1325, %v1359
        %1376 = vrot.lane.b32.xlu0 %v1266, 2
        %v1377 = vpop.permute.xlu0 %1376
        %1378 = vrot.lane.b32.xlu0 %v1269, 2
        %v1379 = vpop.permute.xlu0 %1378
        %1380 = vrot.lane.b32.xlu0 %v1274, 2
        %v1381 = vpop.permute.xlu0 %1380
        %1382 = vrot.lane.b32.xlu0 %v1277, 2
        %v1383 = vpop.permute.xlu0 %1382
        %1384 = vrot.lane.b32.xlu0 %v1282, 2
        %v1385 = vpop.permute.xlu0 %1384
        %1386 = vrot.lane.b32.xlu0 %v1285, 2
        %v1387 = vpop.permute.xlu0 %1386
        %1388 = vrot.lane.b32.xlu0 %v1290, 2
        %v1389 = vpop.permute.xlu0 %1388
        %1390 = vrot.lane.b32.xlu0 %v1293, 2
        %v1391 = vpop.permute.xlu0 %1390
        %1392 = vrot.lane.b32.xlu0 %v1298, 2
        %v1393 = vpop.permute.xlu0 %1392
        %1394 = vrot.lane.b32.xlu0 %v1301, 2
        %v1395 = vpop.permute.xlu0 %1394
        %1396 = vrot.lane.b32.xlu0 %v1306, 2
        %v1397 = vpop.permute.xlu0 %1396
        %1398 = vrot.lane.b32.xlu0 %v1309, 2
        %v1399 = vpop.permute.xlu0 %1398
        %1400 = vrot.lane.b32.xlu0 %v1314, 2
        %v1401 = vpop.permute.xlu0 %1400
        %1402 = vrot.lane.b32.xlu0 %v1317, 2
        %v1403 = vpop.permute.xlu0 %1402
        %1404 = vrot.lane.b32.xlu0 %v1322, 2
        %v1405 = vpop.permute.xlu0 %1404
        %1406 = vrot.lane.b32.xlu0 %v1325, 2
        %v1407 = vpop.permute.xlu0 %1406
        %v1408 = vmax.f32 %v1360, %v1377
        %v1409 = vmax.f32 %v1361, %v1379
        %v1410 = vmax.f32 %v1362, %v1381
        %v1411 = vmax.f32 %v1363, %v1383
        %v1412 = vmax.f32 %v1364, %v1385
        %v1413 = vmax.f32 %v1365, %v1387
        %v1414 = vmax.f32 %v1366, %v1389
        %v1415 = vmax.f32 %v1367, %v1391
        %v1416 = vmax.f32 %v1368, %v1393
        %v1417 = vmax.f32 %v1369, %v1395
        %v1418 = vmax.f32 %v1370, %v1397
        %v1419 = vmax.f32 %v1371, %v1399
        %v1420 = vmax.f32 %v1372, %v1401
        %v1421 = vmax.f32 %v1373, %v1403
        %v1422 = vmax.f32 %v1374, %v1405
        %v1423 = vmax.f32 %v1375, %v1407
        %1424 = vrot.lane.b32.xlu0 %v1266, 126
        %v1425 = vpop.permute.xlu0 %1424
        %1426 = vrot.lane.b32.xlu0 %v1269, 126
        %v1427 = vpop.permute.xlu0 %1426
        %1428 = vrot.lane.b32.xlu0 %v1274, 126
        %v1429 = vpop.permute.xlu0 %1428
        %1430 = vrot.lane.b32.xlu0 %v1277, 126
        %v1431 = vpop.permute.xlu0 %1430
        %1432 = vrot.lane.b32.xlu0 %v1282, 126
        %v1433 = vpop.permute.xlu0 %1432
        %1434 = vrot.lane.b32.xlu0 %v1285, 126
        %v1435 = vpop.permute.xlu0 %1434
        %1436 = vrot.lane.b32.xlu0 %v1290, 126
        %v1437 = vpop.permute.xlu0 %1436
        %1438 = vrot.lane.b32.xlu0 %v1293, 126
        %v1439 = vpop.permute.xlu0 %1438
        %1440 = vrot.lane.b32.xlu0 %v1298, 126
        %v1441 = vpop.permute.xlu0 %1440
        %1442 = vrot.lane.b32.xlu0 %v1301, 126
        %v1443 = vpop.permute.xlu0 %1442
        %1444 = vrot.lane.b32.xlu0 %v1306, 126
        %v1445 = vpop.permute.xlu0 %1444
        %1446 = vrot.lane.b32.xlu0 %v1309, 126
        %v1447 = vpop.permute.xlu0 %1446
        %1448 = vrot.lane.b32.xlu0 %v1314, 126
        %v1449 = vpop.permute.xlu0 %1448
        %1450 = vrot.lane.b32.xlu0 %v1317, 126
        %v1451 = vpop.permute.xlu0 %1450
        %1452 = vrot.lane.b32.xlu0 %v1322, 126
        %v1453 = vpop.permute.xlu0 %1452
        %1454 = vrot.lane.b32.xlu0 %v1325, 126
        %v1455 = vpop.permute.xlu0 %1454
        %v1456 = vmax.f32 %v1408, %v1425
        %v1457 = vmax.f32 %v1409, %v1427
        %v1458 = vmax.f32 %v1410, %v1429
        %v1459 = vmax.f32 %v1411, %v1431
        %v1460 = vmax.f32 %v1412, %v1433
        %v1461 = vmax.f32 %v1413, %v1435
        %v1462 = vmax.f32 %v1414, %v1437
        %v1463 = vmax.f32 %v1415, %v1439
        %v1464 = vmax.f32 %v1416, %v1441
        %v1465 = vmax.f32 %v1417, %v1443
        %v1466 = vmax.f32 %v1418, %v1445
        %v1467 = vmax.f32 %v1419, %v1447
        %v1468 = vmax.f32 %v1420, %v1449
        %v1469 = vmax.f32 %v1421, %v1451
        %v1470 = vmax.f32 %v1422, %v1453
        %v1471 = vmax.f32 %v1423, %v1455
        %1472 = vrot.lane.b32.xlu0 %v1266, 127
        %v1473 = vpop.permute.xlu0 %1472
        %1474 = vrot.lane.b32.xlu0 %v1269, 127
        %v1475 = vpop.permute.xlu0 %1474
        %1476 = vrot.lane.b32.xlu0 %v1274, 127
        %v1477 = vpop.permute.xlu0 %1476
        %1478 = vrot.lane.b32.xlu0 %v1277, 127
        %v1479 = vpop.permute.xlu0 %1478
        %1480 = vrot.lane.b32.xlu0 %v1282, 127
        %v1481 = vpop.permute.xlu0 %1480
        %1482 = vrot.lane.b32.xlu0 %v1285, 127
        %v1483 = vpop.permute.xlu0 %1482
        %1484 = vrot.lane.b32.xlu0 %v1290, 127
        %v1485 = vpop.permute.xlu0 %1484
        %1486 = vrot.lane.b32.xlu0 %v1293, 127
        %v1487 = vpop.permute.xlu0 %1486
        %1488 = vrot.lane.b32.xlu0 %v1298, 127
        %v1489 = vpop.permute.xlu0 %1488
        %1490 = vrot.lane.b32.xlu0 %v1301, 127
        %v1491 = vpop.permute.xlu0 %1490
        %1492 = vrot.lane.b32.xlu0 %v1306, 127
        %v1493 = vpop.permute.xlu0 %1492
        %1494 = vrot.lane.b32.xlu0 %v1309, 127
        %v1495 = vpop.permute.xlu0 %1494
        %1496 = vrot.lane.b32.xlu0 %v1314, 127
        %v1497 = vpop.permute.xlu0 %1496
        %1498 = vrot.lane.b32.xlu0 %v1317, 127
        %v1499 = vpop.permute.xlu0 %1498
        %1500 = vrot.lane.b32.xlu0 %v1322, 127
        %v1501 = vpop.permute.xlu0 %1500
        %1502 = vrot.lane.b32.xlu0 %v1325, 127
        %v1503 = vpop.permute.xlu0 %1502
        %v1504 = vmax.f32 %v1456, %v1473
        %v1505 = vmax.f32 %v1457, %v1475
        %v1506 = vmax.f32 %v1458, %v1477
        %v1507 = vmax.f32 %v1459, %v1479
        %v1508 = vmax.f32 %v1460, %v1481
        %v1509 = vmax.f32 %v1461, %v1483
        %v1510 = vmax.f32 %v1462, %v1485
        %v1511 = vmax.f32 %v1463, %v1487
        %v1512 = vmax.f32 %v1464, %v1489
        %v1513 = vmax.f32 %v1465, %v1491
        %v1514 = vmax.f32 %v1466, %v1493
        %v1515 = vmax.f32 %v1467, %v1495
        %v1516 = vmax.f32 %v1468, %v1497
        %v1517 = vmax.f32 %v1469, %v1499
        %v1518 = vmax.f32 %v1470, %v1501
        %v1519 = vmax.f32 %v1471, %v1503
        %v1520 = vsub.f32 %v1266, %v1504
        %v1521 = vsub.f32 %v1269, %v1505
        %v1522 = vsub.f32 %v1274, %v1506
        %v1523 = vsub.f32 %v1277, %v1507
        %v1524 = vsub.f32 %v1282, %v1508
        %v1525 = vsub.f32 %v1285, %v1509
        %v1526 = vsub.f32 %v1290, %v1510
        %v1527 = vsub.f32 %v1293, %v1511
        %v1528 = vsub.f32 %v1298, %v1512
        %v1529 = vsub.f32 %v1301, %v1513
        %v1530 = vsub.f32 %v1306, %v1514
        %v1531 = vsub.f32 %v1309, %v1515
        %v1532 = vsub.f32 %v1314, %v1516
        %v1533 = vsub.f32 %v1317, %v1517
        %v1534 = vsub.f32 %v1322, %v1518
        %v1535 = vsub.f32 %v1325, %v1519
        %v1536 = vmul.f32 %v1520, 1.442695
        %v1537 = vpow.pop %v1536
        %v1538 = vmul.f32 %v1521, 1.442695
        %v1539 = vpow.pop %v1538
        %v1540 = vmul.f32 %v1522, 1.442695
        %v1541 = vpow.pop %v1540
        %v1542 = vmul.f32 %v1523, 1.442695
        %v1543 = vpow.pop %v1542
        %v1544 = vmul.f32 %v1524, 1.442695
        %v1545 = vpow.pop %v1544
        %v1546 = vmul.f32 %v1525, 1.442695
        %v1547 = vpow.pop %v1546
        %v1548 = vmul.f32 %v1526, 1.442695
        %v1549 = vpow.pop %v1548
        %v1550 = vmul.f32 %v1527, 1.442695
        %v1551 = vpow.pop %v1550
        %v1552 = vmul.f32 %v1528, 1.442695
        %v1553 = vpow.pop %v1552
        %v1554 = vmul.f32 %v1529, 1.442695
        %v1555 = vpow.pop %v1554
        %v1556 = vmul.f32 %v1530, 1.442695
        %v1557 = vpow.pop %v1556
        %v1558 = vmul.f32 %v1531, 1.442695
        %v1559 = vpow.pop %v1558
        %v1560 = vmul.f32 %v1532, 1.442695
        %v1561 = vpow.pop %v1560
        %v1562 = vmul.f32 %v1533, 1.442695
        %v1563 = vpow.pop %v1562
        %v1564 = vmul.f32 %v1534, 1.442695
        %v1565 = vpow.pop %v1564
        %v1566 = vmul.f32 %v1535, 1.442695
        %v1567 = vpow.pop %v1566
        %v1568 = vpack.c.bf16 %v1539, %v1537
        %v1569 = vpack.c.bf16 %v1543, %v1541
        %v1570 = vpack.c.bf16 %v1547, %v1545
        %v1571 = vpack.c.bf16 %v1551, %v1549
        %v1572 = vpack.c.bf16 %v1555, %v1553
        %v1573 = vpack.c.bf16 %v1559, %v1557
        %v1574 = vpack.c.bf16 %v1563, %v1561
        %v1575 = vpack.c.bf16 %v1567, %v1565
        %v1576 = vld [vmem:[%s3 + $0x1c0] sm:$0xf]
        %v1577 = vld [vmem:[%s3 + $0x1c4] sm:$0xf]
        %v1578 = vld [vmem:[%s3 + $0x1c8] sm:$0xf]
        %v1579 = vld [vmem:[%s3 + $0x1cc] sm:$0xf]
        %v1580 = vld [vmem:[%s3 + $0x1d0] sm:$0xf]
        %v1581 = vld [vmem:[%s3 + $0x1d4] sm:$0xf]
        %v1582 = vld [vmem:[%s3 + $0x1d8] sm:$0xf]
        %v1583 = vld [vmem:[%s3 + $0x1dc] sm:$0xf]
        %v1584 = vld [vmem:[%s3 + $0x1e0] sm:$0xf]
        %v1585 = vld [vmem:[%s3 + $0x1e4] sm:$0xf]
        %v1586 = vld [vmem:[%s3 + $0x1e8] sm:$0xf]
        %v1587 = vld [vmem:[%s3 + $0x1ec] sm:$0xf]
        %v1588 = vld [vmem:[%s3 + $0x1f0] sm:$0xf]
        %v1589 = vld [vmem:[%s3 + $0x1f4] sm:$0xf]
        %v1590 = vld [vmem:[%s3 + $0x1f8] sm:$0xf]
        %v1591 = vld [vmem:[%s3 + $0x1fc] sm:$0xf]
        %v1608 = vunpack.c.l.b16 %v1576
        %v1609 = vunpack.c.l.b16 %v1577
        %v1610 = vunpack.c.l.b16 %v1578
        %v1611 = vunpack.c.l.b16 %v1579
        %v1612 = vunpack.c.l.b16 %v1580
        %v1613 = vunpack.c.l.b16 %v1581
        %v1614 = vunpack.c.l.b16 %v1582
        %v1615 = vunpack.c.l.b16 %v1583
        %v1616 = vunpack.c.l.b16 %v1584
        %v1617 = vunpack.c.l.b16 %v1585
        %v1618 = vunpack.c.l.b16 %v1586
        %v1619 = vunpack.c.l.b16 %v1587
        %v1620 = vunpack.c.l.b16 %v1588
        %v1621 = vunpack.c.l.b16 %v1589
        %v1622 = vunpack.c.l.b16 %v1590
        %v1623 = vunpack.c.l.b16 %v1591
        %v1624 = vpack.c.b16 %v1609, %v1608
        %v1625 = vpack.c.b16 %v1611, %v1610
        %v1626 = vpack.c.b16 %v1613, %v1612
        %v1627 = vpack.c.b16 %v1615, %v1614
        %v1628 = vpack.c.b16 %v1617, %v1616
        %v1629 = vpack.c.b16 %v1619, %v1618
        %v1630 = vpack.c.b16 %v1621, %v1620
        %v1631 = vpack.c.b16 %v1623, %v1622
        %1640 = vmatprep.subr.bf16.mxu0 0
        %1641 = vmatpush1.bf16.msra.mxu0 %v1631
        %1642 = vmatprep.subr.bf16.mxu0 0
        %1643 = vmatpush1.bf16.msra.mxu0 %v1630
        %1644 = vmatprep.subr.bf16.mxu0 0
        %1645 = vmatpush1.bf16.msra.mxu0 %v1629
        %1646 = vmatprep.subr.bf16.mxu0 0
        %1647 = vmatpush1.bf16.msra.mxu0 %v1628
        %1648 = vmatprep.subr.bf16.mxu0 0
        %1649 = vmatpush1.bf16.msra.mxu0 %v1627
        %1650 = vmatprep.subr.bf16.mxu0 0
        %1651 = vmatpush1.bf16.msra.mxu0 %v1626
        %1652 = vmatprep.subr.bf16.mxu0 0
        %1653 = vmatpush1.bf16.msra.mxu0 %v1625
        %1654 = vmatprep.subr.bf16.mxu0 0
        %1655 = vmatpush1.bf16.msra.mxu0 %v1624
        %1656 = vmatprep.subr.bf16.mxu0 0
        %1657 = vmatpush2.bf16.msra.mxu0 0
        %1658 = vmatprep.subr.bf16.mxu0 0
        %1659 = vmatpush2.bf16.msra.mxu0 0
        %1660 = vmatprep.subr.bf16.mxu0 0
        %1661 = vmatpush2.bf16.msra.mxu0 0
        %1662 = vmatprep.subr.bf16.mxu0 0
        %1663 = vmatpush2.bf16.msra.mxu0 0
        %1664 = vmatprep.subr.bf16.mxu0 0
        %1665 = vmatpush2.bf16.msra.mxu0 0
        %1666 = vmatprep.subr.bf16.mxu0 0
        %1667 = vmatpush2.bf16.msra.mxu0 0
        %1668 = vmatprep.subr.bf16.mxu0 0
        %1669 = vmatpush2.bf16.msra.mxu0 0
        %1670 = vmatprep.subr.bf16.mxu0 0
        %1671 = vmatpush2.bf16.msra.mxu0 0
        %1672 = vmatprep.mubr.bf16.mxu0 0
        %1673 = vmatmul.mubr.bf16.gmra.mxu0 %v1568
        %v1674 = vpop.f32.mrf.mxu0
        %v1675 = vadd.f32 0.0, %v1674
        %v1676 = vpop.f32.mrf.mxu0
        %v1677 = vpop.f32.mrf.mxu0
        %v1678 = vadd.f32 0.0, %v1677
        %v1679 = vpop.f32.mrf.mxu0
        %1680 = vmatprep.mubr.bf16.mxu0 0
        %1681 = vmatmul.mubr.bf16.gmra.mxu0 %v1569
        %v1682 = vpop.f32.mrf.mxu0
        %v1683 = vadd.f32 0.0, %v1682
        %v1684 = vpop.f32.mrf.mxu0
        %v1685 = vpop.f32.mrf.mxu0
        %v1686 = vadd.f32 0.0, %v1685
        %v1687 = vpop.f32.mrf.mxu0
        %1688 = vmatprep.mubr.bf16.mxu0 0
        %1689 = vmatmul.mubr.bf16.gmra.mxu0 %v1570
        %v1690 = vpop.f32.mrf.mxu0
        %v1691 = vadd.f32 0.0, %v1690
        %v1692 = vpop.f32.mrf.mxu0
        %v1693 = vpop.f32.mrf.mxu0
        %v1694 = vadd.f32 0.0, %v1693
        %v1695 = vpop.f32.mrf.mxu0
        %1696 = vmatprep.mubr.bf16.mxu0 0
        %1697 = vmatmul.mubr.bf16.gmra.mxu0 %v1571
        %v1698 = vpop.f32.mrf.mxu0
        %v1699 = vadd.f32 0.0, %v1698
        %v1700 = vpop.f32.mrf.mxu0
        %v1701 = vpop.f32.mrf.mxu0
        %v1702 = vadd.f32 0.0, %v1701
        %v1703 = vpop.f32.mrf.mxu0
        %1704 = vmatprep.mubr.bf16.mxu0 0
        %1705 = vmatmul.mubr.bf16.gmra.mxu0 %v1572
        %v1706 = vpop.f32.mrf.mxu0
        %v1707 = vadd.f32 0.0, %v1706
        %v1708 = vpop.f32.mrf.mxu0
        %v1709 = vpop.f32.mrf.mxu0
        %v1710 = vadd.f32 0.0, %v1709
        %v1711 = vpop.f32.mrf.mxu0
        %1712 = vmatprep.mubr.bf16.mxu0 0
        %1713 = vmatmul.mubr.bf16.gmra.mxu0 %v1573
        %v1714 = vpop.f32.mrf.mxu0
        %v1715 = vadd.f32 0.0, %v1714
        %v1716 = vpop.f32.mrf.mxu0
        %v1717 = vpop.f32.mrf.mxu0
        %v1718 = vadd.f32 0.0, %v1717
        %v1719 = vpop.f32.mrf.mxu0
        %1720 = vmatprep.mubr.bf16.mxu0 0
        %1721 = vmatmul.mubr.bf16.gmra.mxu0 %v1574
        %v1722 = vpop.f32.mrf.mxu0
        %v1723 = vadd.f32 0.0, %v1722
        %v1724 = vpop.f32.mrf.mxu0
        %v1725 = vpop.f32.mrf.mxu0
        %v1726 = vadd.f32 0.0, %v1725
        %v1727 = vpop.f32.mrf.mxu0
        %1728 = vmatprep.mubr.bf16.mxu0 0
        %1729 = vmatmul.mubr.bf16.gmra.mxu0 %v1575
        %v1730 = vpop.f32.mrf.mxu0
        %v1731 = vadd.f32 0.0, %v1730
        %v1732 = vpop.f32.mrf.mxu0
        %v1733 = vpop.f32.mrf.mxu0
        %v1734 = vadd.f32 0.0, %v1733
        %v1735 = vpop.f32.mrf.mxu0
        %1736 = vdwg.mxu0
        %v1737 = vld [vmem:[%s3 + $0x200] sm:$0xf]
        %v1738 = vld [vmem:[%s3 + $0x204] sm:$0xf]
        %v1739 = vld [vmem:[%s3 + $0x208] sm:$0xf]
        %v1740 = vld [vmem:[%s3 + $0x20c] sm:$0xf]
        %v1741 = vld [vmem:[%s3 + $0x210] sm:$0xf]
        %v1742 = vld [vmem:[%s3 + $0x214] sm:$0xf]
        %v1743 = vld [vmem:[%s3 + $0x218] sm:$0xf]
        %v1744 = vld [vmem:[%s3 + $0x21c] sm:$0xf]
        %v1745 = vld [vmem:[%s3 + $0x220] sm:$0xf]
        %v1746 = vld [vmem:[%s3 + $0x224] sm:$0xf]
        %v1747 = vld [vmem:[%s3 + $0x228] sm:$0xf]
        %v1748 = vld [vmem:[%s3 + $0x22c] sm:$0xf]
        %v1749 = vld [vmem:[%s3 + $0x230] sm:$0xf]
        %v1750 = vld [vmem:[%s3 + $0x234] sm:$0xf]
        %v1751 = vld [vmem:[%s3 + $0x238] sm:$0xf]
        %v1752 = vld [vmem:[%s3 + $0x23c] sm:$0xf]
        %v1769 = vunpack.c.l.b16 %v1737
        %v1770 = vunpack.c.l.b16 %v1738
        %v1771 = vunpack.c.l.b16 %v1739
        %v1772 = vunpack.c.l.b16 %v1740
        %v1773 = vunpack.c.l.b16 %v1741
        %v1774 = vunpack.c.l.b16 %v1742
        %v1775 = vunpack.c.l.b16 %v1743
        %v1776 = vunpack.c.l.b16 %v1744
        %v1777 = vunpack.c.l.b16 %v1745
        %v1778 = vunpack.c.l.b16 %v1746
        %v1779 = vunpack.c.l.b16 %v1747
        %v1780 = vunpack.c.l.b16 %v1748
        %v1781 = vunpack.c.l.b16 %v1749
        %v1782 = vunpack.c.l.b16 %v1750
        %v1783 = vunpack.c.l.b16 %v1751
        %v1784 = vunpack.c.l.b16 %v1752
        %v1785 = vpack.c.b16 %v1770, %v1769
        %v1786 = vpack.c.b16 %v1772, %v1771
        %v1787 = vpack.c.b16 %v1774, %v1773
        %v1788 = vpack.c.b16 %v1776, %v1775
        %v1789 = vpack.c.b16 %v1778, %v1777
        %v1790 = vpack.c.b16 %v1780, %v1779
        %v1791 = vpack.c.b16 %v1782, %v1781
        %v1792 = vpack.c.b16 %v1784, %v1783
        %1801 = vmatprep.subr.bf16.mxu0 0
        %1802 = vmatpush1.bf16.msra.mxu0 %v1792
        %1803 = vmatprep.subr.bf16.mxu0 0
        %1804 = vmatpush1.bf16.msra.mxu0 %v1791
        %1805 = vmatprep.subr.bf16.mxu0 0
        %1806 = vmatpush1.bf16.msra.mxu0 %v1790
        %1807 = vmatprep.subr.bf16.mxu0 0
        %1808 = vmatpush1.bf16.msra.mxu0 %v1789
        %1809 = vmatprep.subr.bf16.mxu0 0
        %1810 = vmatpush1.bf16.msra.mxu0 %v1788
        %1811 = vmatprep.subr.bf16.mxu0 0
        %1812 = vmatpush1.bf16.msra.mxu0 %v1787
        %1813 = vmatprep.subr.bf16.mxu0 0
        %1814 = vmatpush1.bf16.msra.mxu0 %v1786
        %1815 = vmatprep.subr.bf16.mxu0 0
        %1816 = vmatpush1.bf16.msra.mxu0 %v1785
        %1817 = vmatprep.subr.bf16.mxu0 0
        %1818 = vmatpush2.bf16.msra.mxu0 0
        %1819 = vmatprep.subr.bf16.mxu0 0
        %1820 = vmatpush2.bf16.msra.mxu0 0
        %1821 = vmatprep.subr.bf16.mxu0 0
        %1822 = vmatpush2.bf16.msra.mxu0 0
        %1823 = vmatprep.subr.bf16.mxu0 0
        %1824 = vmatpush2.bf16.msra.mxu0 0
        %1825 = vmatprep.subr.bf16.mxu0 0
        %1826 = vmatpush2.bf16.msra.mxu0 0
        %1827 = vmatprep.subr.bf16.mxu0 0
        %1828 = vmatpush2.bf16.msra.mxu0 0
        %1829 = vmatprep.subr.bf16.mxu0 0
        %1830 = vmatpush2.bf16.msra.mxu0 0
        %1831 = vmatprep.subr.bf16.mxu0 0
        %1832 = vmatpush2.bf16.msra.mxu0 0
        %1833 = vmatprep.mubr.bf16.mxu0 0
        %1834 = vmatmul.mubr.bf16.gmra.mxu0 %v1568
        %v1835 = vpop.f32.mrf.mxu0
        %v1836 = vadd.f32 0.0, %v1835
        %v1837 = vpop.f32.mrf.mxu0
        %v1838 = vpop.f32.mrf.mxu0
        %v1839 = vadd.f32 0.0, %v1838
        %v1840 = vpop.f32.mrf.mxu0
        %1841 = vmatprep.mubr.bf16.mxu0 0
        %1842 = vmatmul.mubr.bf16.gmra.mxu0 %v1569
        %v1843 = vpop.f32.mrf.mxu0
        %v1844 = vadd.f32 0.0, %v1843
        %v1845 = vpop.f32.mrf.mxu0
        %v1846 = vpop.f32.mrf.mxu0
        %v1847 = vadd.f32 0.0, %v1846
        %v1848 = vpop.f32.mrf.mxu0
        %1849 = vmatprep.mubr.bf16.mxu0 0
        %1850 = vmatmul.mubr.bf16.gmra.mxu0 %v1570
        %v1851 = vpop.f32.mrf.mxu0
        %v1852 = vadd.f32 0.0, %v1851
        %v1853 = vpop.f32.mrf.mxu0
        %v1854 = vpop.f32.mrf.mxu0
        %v1855 = vadd.f32 0.0, %v1854
        %v1856 = vpop.f32.mrf.mxu0
        %1857 = vmatprep.mubr.bf16.mxu0 0
        %1858 = vmatmul.mubr.bf16.gmra.mxu0 %v1571
        %v1859 = vpop.f32.mrf.mxu0
        %v1860 = vadd.f32 0.0, %v1859
        %v1861 = vpop.f32.mrf.mxu0
        %v1862 = vpop.f32.mrf.mxu0
        %v1863 = vadd.f32 0.0, %v1862
        %v1864 = vpop.f32.mrf.mxu0
        %1865 = vmatprep.mubr.bf16.mxu0 0
        %1866 = vmatmul.mubr.bf16.gmra.mxu0 %v1572
        %v1867 = vpop.f32.mrf.mxu0
        %v1868 = vadd.f32 0.0, %v1867
        %v1869 = vpop.f32.mrf.mxu0
        %v1870 = vpop.f32.mrf.mxu0
        %v1871 = vadd.f32 0.0, %v1870
        %v1872 = vpop.f32.mrf.mxu0
        %1873 = vmatprep.mubr.bf16.mxu0 0
        %1874 = vmatmul.mubr.bf16.gmra.mxu0 %v1573
        %v1875 = vpop.f32.mrf.mxu0
        %v1876 = vadd.f32 0.0, %v1875
        %v1877 = vpop.f32.mrf.mxu0
        %v1878 = vpop.f32.mrf.mxu0
        %v1879 = vadd.f32 0.0, %v1878
        %v1880 = vpop.f32.mrf.mxu0
        %1881 = vmatprep.mubr.bf16.mxu0 0
        %1882 = vmatmul.mubr.bf16.gmra.mxu0 %v1574
        %v1883 = vpop.f32.mrf.mxu0
        %v1884 = vadd.f32 0.0, %v1883
        %v1885 = vpop.f32.mrf.mxu0
        %v1886 = vpop.f32.mrf.mxu0
        %v1887 = vadd.f32 0.0, %v1886
        %v1888 = vpop.f32.mrf.mxu0
        %1889 = vmatprep.mubr.bf16.mxu0 0
        %1890 = vmatmul.mubr.bf16.gmra.mxu0 %v1575
        %v1891 = vpop.f32.mrf.mxu0
        %v1892 = vadd.f32 0.0, %v1891
        %v1893 = vpop.f32.mrf.mxu0
        %v1894 = vpop.f32.mrf.mxu0
        %v1895 = vadd.f32 0.0, %v1894
        %v1896 = vpop.f32.mrf.mxu0
        %1897 = vdwg.mxu0
        %v1898 = vmul.f32 %v1139, %v1675
        %v1899 = vmul.f32 %v1140, %v1678
        %v1900 = vmul.f32 %v1141, %v1683
        %v1901 = vmul.f32 %v1142, %v1686
        %v1902 = vmul.f32 %v1143, %v1691
        %v1903 = vmul.f32 %v1144, %v1694
        %v1904 = vmul.f32 %v1145, %v1699
        %v1905 = vmul.f32 %v1146, %v1702
        %v1906 = vmul.f32 %v1147, %v1707
        %v1907 = vmul.f32 %v1148, %v1710
        %v1908 = vmul.f32 %v1149, %v1715
        %v1909 = vmul.f32 %v1150, %v1718
        %v1910 = vmul.f32 %v1151, %v1723
        %v1911 = vmul.f32 %v1152, %v1726
        %v1912 = vmul.f32 %v1153, %v1731
        %v1913 = vmul.f32 %v1154, %v1734
        %v1914 = vrcp.pop %v1836
        %v1915 = vrcp.pop %v1839
        %v1916 = vrcp.pop %v1844
        %v1917 = vrcp.pop %v1847
        %v1918 = vrcp.pop %v1852
        %v1919 = vrcp.pop %v1855
        %v1920 = vrcp.pop %v1860
        %v1921 = vrcp.pop %v1863
        %v1922 = vrcp.pop %v1868
        %v1923 = vrcp.pop %v1871
        %v1924 = vrcp.pop %v1876
        %v1925 = vrcp.pop %v1879
        %v1926 = vrcp.pop %v1884
        %v1927 = vrcp.pop %v1887
        %v1928 = vrcp.pop %v1892
        %v1929 = vrcp.pop %v1895
        %v1930 = vmul.f32 %v1898, %v1914
        %v1931 = vmul.f32 %v1899, %v1915
        %v1932 = vmul.f32 %v1900, %v1916
        %v1933 = vmul.f32 %v1901, %v1917
        %v1934 = vmul.f32 %v1902, %v1918
        %v1935 = vmul.f32 %v1903, %v1919
        %v1936 = vmul.f32 %v1904, %v1920
        %v1937 = vmul.f32 %v1905, %v1921
        %v1938 = vmul.f32 %v1906, %v1922
        %v1939 = vmul.f32 %v1907, %v1923
        %v1940 = vmul.f32 %v1908, %v1924
        %v1941 = vmul.f32 %v1909, %v1925
        %v1942 = vmul.f32 %v1910, %v1926
        %v1943 = vmul.f32 %v1911, %v1927
        %v1944 = vmul.f32 %v1912, %v1928
        %v1945 = vmul.f32 %v1913, %v1929
        %v1946 = vpack.c.bf16 %v1931, %v1930
        %v1947 = vpack.c.bf16 %v1933, %v1932
        %v1948 = vpack.c.bf16 %v1935, %v1934
        %v1949 = vpack.c.bf16 %v1937, %v1936
        %v1950 = vpack.c.bf16 %v1939, %v1938
        %v1951 = vpack.c.bf16 %v1941, %v1940
        %v1952 = vpack.c.bf16 %v1943, %v1942
        %v1953 = vpack.c.bf16 %v1945, %v1944
        %v1954 = vld [vmem:[%s3 + $0x240] sm:$0xf]
        %v1955 = vld [vmem:[%s3 + $0x244] sm:$0xf]
        %v1956 = vld [vmem:[%s3 + $0x248] sm:$0xf]
        %v1957 = vld [vmem:[%s3 + $0x24c] sm:$0xf]
        %v1958 = vld [vmem:[%s3 + $0x250] sm:$0xf]
        %v1959 = vld [vmem:[%s3 + $0x254] sm:$0xf]
        %v1960 = vld [vmem:[%s3 + $0x258] sm:$0xf]
        %v1961 = vld [vmem:[%s3 + $0x25c] sm:$0xf]
        %v1962 = vld [vmem:[%s3 + $0x260] sm:$0xf]
        %v1963 = vld [vmem:[%s3 + $0x264] sm:$0xf]
        %v1964 = vld [vmem:[%s3 + $0x268] sm:$0xf]
        %v1965 = vld [vmem:[%s3 + $0x26c] sm:$0xf]
        %v1966 = vld [vmem:[%s3 + $0x270] sm:$0xf]
        %v1967 = vld [vmem:[%s3 + $0x274] sm:$0xf]
        %v1968 = vld [vmem:[%s3 + $0x278] sm:$0xf]
        %v1969 = vld [vmem:[%s3 + $0x27c] sm:$0xf]
        %v1970 = vlaneseq
        %v1971 = vshrl.u32 %v1970, 7
        %v1972 = vsub.s32 0, %v1971
        %v1973 = vrot.slane %v282, %v1972
        %v1990 = vunpack.c.l.b16 %v1954
        %v1991 = vunpack.c.l.b16 %v1955
        %v1992 = vunpack.c.l.b16 %v1956
        %v1993 = vunpack.c.l.b16 %v1957
        %v1994 = vunpack.c.l.b16 %v1958
        %v1995 = vunpack.c.l.b16 %v1959
        %v1996 = vunpack.c.l.b16 %v1960
        %v1997 = vunpack.c.l.b16 %v1961
        %v1998 = vunpack.c.l.b16 %v1962
        %v1999 = vunpack.c.l.b16 %v1963
        %v2000 = vunpack.c.l.b16 %v1964
        %v2001 = vunpack.c.l.b16 %v1965
        %v2002 = vunpack.c.l.b16 %v1966
        %v2003 = vunpack.c.l.b16 %v1967
        %v2004 = vunpack.c.l.b16 %v1968
        %v2005 = vunpack.c.l.b16 %v1969
        %v2006 = vpack.c.b16 %v1991, %v1990
        %v2007 = vpack.c.b16 %v1993, %v1992
        %v2008 = vpack.c.b16 %v1995, %v1994
        %v2009 = vpack.c.b16 %v1997, %v1996
        %v2010 = vpack.c.b16 %v1999, %v1998
        %v2011 = vpack.c.b16 %v2001, %v2000
        %v2012 = vpack.c.b16 %v2003, %v2002
        %v2013 = vpack.c.b16 %v2005, %v2004
        %2022 = vmatprep.subr.bf16.mxu0 0
        %2023 = vmatpush1.bf16.msra.mxu0 %v2013
        %2024 = vmatprep.subr.bf16.mxu0 0
        %2025 = vmatpush1.bf16.msra.mxu0 %v2012
        %2026 = vmatprep.subr.bf16.mxu0 0
        %2027 = vmatpush1.bf16.msra.mxu0 %v2011
        %2028 = vmatprep.subr.bf16.mxu0 0
        %2029 = vmatpush1.bf16.msra.mxu0 %v2010
        %2030 = vmatprep.subr.bf16.mxu0 0
        %2031 = vmatpush1.bf16.msra.mxu0 %v2009
        %2032 = vmatprep.subr.bf16.mxu0 0
        %2033 = vmatpush1.bf16.msra.mxu0 %v2008
        %2034 = vmatprep.subr.bf16.mxu0 0
        %2035 = vmatpush1.bf16.msra.mxu0 %v2007
        %2036 = vmatprep.subr.bf16.mxu0 0
        %2037 = vmatpush1.bf16.msra.mxu0 %v2006
        %2038 = vmatprep.subr.bf16.mxu0 0
        %2039 = vmatpush2.bf16.msra.mxu0 0
        %2040 = vmatprep.subr.bf16.mxu0 0
        %2041 = vmatpush2.bf16.msra.mxu0 0
        %2042 = vmatprep.subr.bf16.mxu0 0
        %2043 = vmatpush2.bf16.msra.mxu0 0
        %2044 = vmatprep.subr.bf16.mxu0 0
        %2045 = vmatpush2.bf16.msra.mxu0 0
        %2046 = vmatprep.subr.bf16.mxu0 0
        %2047 = vmatpush2.bf16.msra.mxu0 0
        %2048 = vmatprep.subr.bf16.mxu0 0
        %2049 = vmatpush2.bf16.msra.mxu0 0
        %2050 = vmatprep.subr.bf16.mxu0 0
        %2051 = vmatpush2.bf16.msra.mxu0 0
        %2052 = vmatprep.subr.bf16.mxu0 0
        %2053 = vmatpush2.bf16.msra.mxu0 0
        %2054 = vmatprep.mubr.bf16.mxu0 0
        %2055 = vmatmul.mubr.bf16.gmra.mxu0 %v1946
        %v2056 = vpop.f32.mrf.mxu0
        %v2057 = vadd.f32 %v1973, %v2056
        %v2058 = vpop.f32.mrf.mxu0
        %v2059 = vpop.f32.mrf.mxu0
        %v2060 = vadd.f32 %v1973, %v2059
        %v2061 = vpop.f32.mrf.mxu0
        %2062 = vmatprep.mubr.bf16.mxu0 0
        %2063 = vmatmul.mubr.bf16.gmra.mxu0 %v1947
        %v2064 = vpop.f32.mrf.mxu0
        %v2065 = vadd.f32 %v1973, %v2064
        %v2066 = vpop.f32.mrf.mxu0
        %v2067 = vpop.f32.mrf.mxu0
        %v2068 = vadd.f32 %v1973, %v2067
        %v2069 = vpop.f32.mrf.mxu0
        %2070 = vmatprep.mubr.bf16.mxu0 0
        %2071 = vmatmul.mubr.bf16.gmra.mxu0 %v1948
        %v2072 = vpop.f32.mrf.mxu0
        %v2073 = vadd.f32 %v1973, %v2072
        %v2074 = vpop.f32.mrf.mxu0
        %v2075 = vpop.f32.mrf.mxu0
        %v2076 = vadd.f32 %v1973, %v2075
        %v2077 = vpop.f32.mrf.mxu0
        %2078 = vmatprep.mubr.bf16.mxu0 0
        %2079 = vmatmul.mubr.bf16.gmra.mxu0 %v1949
        %v2080 = vpop.f32.mrf.mxu0
        %v2081 = vadd.f32 %v1973, %v2080
        %v2082 = vpop.f32.mrf.mxu0
        %v2083 = vpop.f32.mrf.mxu0
        %v2084 = vadd.f32 %v1973, %v2083
        %v2085 = vpop.f32.mrf.mxu0
        %2086 = vmatprep.mubr.bf16.mxu0 0
        %2087 = vmatmul.mubr.bf16.gmra.mxu0 %v1950
        %v2088 = vpop.f32.mrf.mxu0
        %v2089 = vadd.f32 %v1973, %v2088
        %v2090 = vpop.f32.mrf.mxu0
        %v2091 = vpop.f32.mrf.mxu0
        %v2092 = vadd.f32 %v1973, %v2091
        %v2093 = vpop.f32.mrf.mxu0
        %2094 = vmatprep.mubr.bf16.mxu0 0
        %2095 = vmatmul.mubr.bf16.gmra.mxu0 %v1951
        %v2096 = vpop.f32.mrf.mxu0
        %v2097 = vadd.f32 %v1973, %v2096
        %v2098 = vpop.f32.mrf.mxu0
        %v2099 = vpop.f32.mrf.mxu0
        %v2100 = vadd.f32 %v1973, %v2099
        %v2101 = vpop.f32.mrf.mxu0
        %2102 = vmatprep.mubr.bf16.mxu0 0
        %2103 = vmatmul.mubr.bf16.gmra.mxu0 %v1952
        %v2104 = vpop.f32.mrf.mxu0
        %v2105 = vadd.f32 %v1973, %v2104
        %v2106 = vpop.f32.mrf.mxu0
        %v2107 = vpop.f32.mrf.mxu0
        %v2108 = vadd.f32 %v1973, %v2107
        %v2109 = vpop.f32.mrf.mxu0
        %2110 = vmatprep.mubr.bf16.mxu0 0
        %2111 = vmatmul.mubr.bf16.gmra.mxu0 %v1953
        %v2112 = vpop.f32.mrf.mxu0
        %v2113 = vadd.f32 %v1973, %v2112
        %v2114 = vpop.f32.mrf.mxu0
        %v2115 = vpop.f32.mrf.mxu0
        %v2116 = vadd.f32 %v1973, %v2115
        %v2117 = vpop.f32.mrf.mxu0
        %2118 = vdwg.mxu0
        %v2119 = vmax.f32 %v2057, 0.0
        %v2120 = vmax.f32 %v2060, 0.0
        %v2121 = vmax.f32 %v2065, 0.0
        %v2122 = vmax.f32 %v2068, 0.0
        %v2123 = vmax.f32 %v2073, 0.0
        %v2124 = vmax.f32 %v2076, 0.0
        %v2125 = vmax.f32 %v2081, 0.0
        %v2126 = vmax.f32 %v2084, 0.0
        %v2127 = vmax.f32 %v2089, 0.0
        %v2128 = vmax.f32 %v2092, 0.0
        %v2129 = vmax.f32 %v2097, 0.0
        %v2130 = vmax.f32 %v2100, 0.0
        %v2131 = vmax.f32 %v2105, 0.0
        %v2132 = vmax.f32 %v2108, 0.0
        %v2133 = vmax.f32 %v2113, 0.0
        %v2134 = vmax.f32 %v2116, 0.0
        %v2135 = vpack.c.bf16 %v2120, %v2119
        %v2136 = vpack.c.bf16 %v2122, %v2121
        %v2137 = vpack.c.bf16 %v2124, %v2123
        %v2138 = vpack.c.bf16 %v2126, %v2125
        %v2139 = vpack.c.bf16 %v2128, %v2127
        %v2140 = vpack.c.bf16 %v2130, %v2129
        %v2141 = vpack.c.bf16 %v2132, %v2131
        %v2142 = vpack.c.bf16 %v2134, %v2133
        %v2143 = vld [vmem:[%s3 + $0x280] sm:$0xf]
        %v2144 = vld [vmem:[%s3 + $0x284] sm:$0xf]
        %v2145 = vld [vmem:[%s3 + $0x288] sm:$0xf]
        %v2146 = vld [vmem:[%s3 + $0x28c] sm:$0xf]
        %v2147 = vld [vmem:[%s3 + $0x290] sm:$0xf]
        %v2148 = vld [vmem:[%s3 + $0x294] sm:$0xf]
        %v2149 = vld [vmem:[%s3 + $0x298] sm:$0xf]
        %v2150 = vld [vmem:[%s3 + $0x29c] sm:$0xf]
        %v2151 = vld [vmem:[%s3 + $0x2a0] sm:$0xf]
        %v2152 = vld [vmem:[%s3 + $0x2a4] sm:$0xf]
        %v2153 = vld [vmem:[%s3 + $0x2a8] sm:$0xf]
        %v2154 = vld [vmem:[%s3 + $0x2ac] sm:$0xf]
        %v2155 = vld [vmem:[%s3 + $0x2b0] sm:$0xf]
        %v2156 = vld [vmem:[%s3 + $0x2b4] sm:$0xf]
        %v2157 = vld [vmem:[%s3 + $0x2b8] sm:$0xf]
        %v2158 = vld [vmem:[%s3 + $0x2bc] sm:$0xf]
        %v2159 = vlaneseq
        %v2160 = vshrl.u32 %v2159, 7
        %v2161 = vsub.s32 0, %v2160
        %v2162 = vrot.slane %v283, %v2161
        %v2179 = vunpack.c.l.b16 %v2143
        %v2180 = vunpack.c.l.b16 %v2144
        %v2181 = vunpack.c.l.b16 %v2145
        %v2182 = vunpack.c.l.b16 %v2146
        %v2183 = vunpack.c.l.b16 %v2147
        %v2184 = vunpack.c.l.b16 %v2148
        %v2185 = vunpack.c.l.b16 %v2149
        %v2186 = vunpack.c.l.b16 %v2150
        %v2187 = vunpack.c.l.b16 %v2151
        %v2188 = vunpack.c.l.b16 %v2152
        %v2189 = vunpack.c.l.b16 %v2153
        %v2190 = vunpack.c.l.b16 %v2154
        %v2191 = vunpack.c.l.b16 %v2155
        %v2192 = vunpack.c.l.b16 %v2156
        %v2193 = vunpack.c.l.b16 %v2157
        %v2194 = vunpack.c.l.b16 %v2158
        %v2195 = vpack.c.b16 %v2180, %v2179
        %v2196 = vpack.c.b16 %v2182, %v2181
        %v2197 = vpack.c.b16 %v2184, %v2183
        %v2198 = vpack.c.b16 %v2186, %v2185
        %v2199 = vpack.c.b16 %v2188, %v2187
        %v2200 = vpack.c.b16 %v2190, %v2189
        %v2201 = vpack.c.b16 %v2192, %v2191
        %v2202 = vpack.c.b16 %v2194, %v2193
        %2211 = vmatprep.subr.bf16.mxu0 0
        %2212 = vmatpush1.bf16.msra.mxu0 %v2202
        %2213 = vmatprep.subr.bf16.mxu0 0
        %2214 = vmatpush1.bf16.msra.mxu0 %v2201
        %2215 = vmatprep.subr.bf16.mxu0 0
        %2216 = vmatpush1.bf16.msra.mxu0 %v2200
        %2217 = vmatprep.subr.bf16.mxu0 0
        %2218 = vmatpush1.bf16.msra.mxu0 %v2199
        %2219 = vmatprep.subr.bf16.mxu0 0
        %2220 = vmatpush1.bf16.msra.mxu0 %v2198
        %2221 = vmatprep.subr.bf16.mxu0 0
        %2222 = vmatpush1.bf16.msra.mxu0 %v2197
        %2223 = vmatprep.subr.bf16.mxu0 0
        %2224 = vmatpush1.bf16.msra.mxu0 %v2196
        %2225 = vmatprep.subr.bf16.mxu0 0
        %2226 = vmatpush1.bf16.msra.mxu0 %v2195
        %2227 = vmatprep.subr.bf16.mxu0 0
        %2228 = vmatpush2.bf16.msra.mxu0 0
        %2229 = vmatprep.subr.bf16.mxu0 0
        %2230 = vmatpush2.bf16.msra.mxu0 0
        %2231 = vmatprep.subr.bf16.mxu0 0
        %2232 = vmatpush2.bf16.msra.mxu0 0
        %2233 = vmatprep.subr.bf16.mxu0 0
        %2234 = vmatpush2.bf16.msra.mxu0 0
        %2235 = vmatprep.subr.bf16.mxu0 0
        %2236 = vmatpush2.bf16.msra.mxu0 0
        %2237 = vmatprep.subr.bf16.mxu0 0
        %2238 = vmatpush2.bf16.msra.mxu0 0
        %2239 = vmatprep.subr.bf16.mxu0 0
        %2240 = vmatpush2.bf16.msra.mxu0 0
        %2241 = vmatprep.subr.bf16.mxu0 0
        %2242 = vmatpush2.bf16.msra.mxu0 0
        %2243 = vmatprep.mubr.bf16.mxu0 0
        %2244 = vmatmul.mubr.bf16.gmra.mxu0 %v2135
        %v2245 = vpop.f32.mrf.mxu0
        %v2246 = vadd.f32 %v2162, %v2245
        %v2247 = vpop.f32.mrf.mxu0
        %v2248 = vpop.f32.mrf.mxu0
        %v2249 = vadd.f32 %v2162, %v2248
        %v2250 = vpop.f32.mrf.mxu0
        %2251 = vmatprep.mubr.bf16.mxu0 0
        %2252 = vmatmul.mubr.bf16.gmra.mxu0 %v2136
        %v2253 = vpop.f32.mrf.mxu0
        %v2254 = vadd.f32 %v2162, %v2253
        %v2255 = vpop.f32.mrf.mxu0
        %v2256 = vpop.f32.mrf.mxu0
        %v2257 = vadd.f32 %v2162, %v2256
        %v2258 = vpop.f32.mrf.mxu0
        %2259 = vmatprep.mubr.bf16.mxu0 0
        %2260 = vmatmul.mubr.bf16.gmra.mxu0 %v2137
        %v2261 = vpop.f32.mrf.mxu0
        %v2262 = vadd.f32 %v2162, %v2261
        %v2263 = vpop.f32.mrf.mxu0
        %v2264 = vpop.f32.mrf.mxu0
        %v2265 = vadd.f32 %v2162, %v2264
        %v2266 = vpop.f32.mrf.mxu0
        %2267 = vmatprep.mubr.bf16.mxu0 0
        %2268 = vmatmul.mubr.bf16.gmra.mxu0 %v2138
        %v2269 = vpop.f32.mrf.mxu0
        %v2270 = vadd.f32 %v2162, %v2269
        %v2271 = vpop.f32.mrf.mxu0
        %v2272 = vpop.f32.mrf.mxu0
        %v2273 = vadd.f32 %v2162, %v2272
        %v2274 = vpop.f32.mrf.mxu0
        %2275 = vmatprep.mubr.bf16.mxu0 0
        %2276 = vmatmul.mubr.bf16.gmra.mxu0 %v2139
        %v2277 = vpop.f32.mrf.mxu0
        %v2278 = vadd.f32 %v2162, %v2277
        %v2279 = vpop.f32.mrf.mxu0
        %v2280 = vpop.f32.mrf.mxu0
        %v2281 = vadd.f32 %v2162, %v2280
        %v2282 = vpop.f32.mrf.mxu0
        %2283 = vmatprep.mubr.bf16.mxu0 0
        %2284 = vmatmul.mubr.bf16.gmra.mxu0 %v2140
        %v2285 = vpop.f32.mrf.mxu0
        %v2286 = vadd.f32 %v2162, %v2285
        %v2287 = vpop.f32.mrf.mxu0
        %v2288 = vpop.f32.mrf.mxu0
        %v2289 = vadd.f32 %v2162, %v2288
        %v2290 = vpop.f32.mrf.mxu0
        %2291 = vmatprep.mubr.bf16.mxu0 0
        %2292 = vmatmul.mubr.bf16.gmra.mxu0 %v2141
        %v2293 = vpop.f32.mrf.mxu0
        %v2294 = vadd.f32 %v2162, %v2293
        %v2295 = vpop.f32.mrf.mxu0
        %v2296 = vpop.f32.mrf.mxu0
        %v2297 = vadd.f32 %v2162, %v2296
        %v2298 = vpop.f32.mrf.mxu0
        %2299 = vmatprep.mubr.bf16.mxu0 0
        %2300 = vmatmul.mubr.bf16.gmra.mxu0 %v2142
        %v2301 = vpop.f32.mrf.mxu0
        %v2302 = vadd.f32 %v2162, %v2301
        %v2303 = vpop.f32.mrf.mxu0
        %v2304 = vpop.f32.mrf.mxu0
        %v2305 = vadd.f32 %v2162, %v2304
        %v2306 = vpop.f32.mrf.mxu0
        %2307 = vdwg.mxu0
        %2308 = vst [vmem:[%s256] sm:$0xff] %v2246
        %2309 = vst [vmem:[%s256 + $0x8] sm:$0xff] %v2249
        %2310 = vst [vmem:[%s256 + $0x10] sm:$0xff] %v2254
        %2311 = vst [vmem:[%s256 + $0x18] sm:$0xff] %v2257
        %2312 = vst [vmem:[%s256 + $0x20] sm:$0xff] %v2262
        %2313 = vst [vmem:[%s256 + $0x28] sm:$0xff] %v2265
        %2314 = vst [vmem:[%s256 + $0x30] sm:$0xff] %v2270
        %2315 = vst [vmem:[%s256 + $0x38] sm:$0xff] %v2273
        %2316 = vst [vmem:[%s256 + $0x40] sm:$0xff] %v2278
        %2317 = vst [vmem:[%s256 + $0x48] sm:$0xff] %v2281
        %2318 = vst [vmem:[%s256 + $0x50] sm:$0xff] %v2286
        %2319 = vst [vmem:[%s256 + $0x58] sm:$0xff] %v2289
        %2320 = vst [vmem:[%s256 + $0x60] sm:$0xff] %v2294
        %2321 = vst [vmem:[%s256 + $0x68] sm:$0xff] %v2297
        %2322 = vst [vmem:[%s256 + $0x70] sm:$0xff] %v2302
        %2323 = vst [vmem:[%s256 + $0x78] sm:$0xff] %v2305
        %s2324 = sand.u32 %s147, 1
        %s2325 = scalar_lea.sflag [#allocation3], %s2324
        %s2326 = sand.u32 %s147, 1
        %s2327 = smul.addr %s2326, 128
        %s2328 = scalar_lea.vmem [#allocation2], %s2327
        // Predicated region
        $region41: #{mention_level_forward.1} parent=39 // pred_check
          %p2329 = pneg %p157
        $region42: #{mention_level_forward.1} parent=39 // pred_check_branch
          %2331 = sbr.rel (%p2329) target = $region44
        $region43: #{mention_level_forward.1} parent=39 // pred_region
          %s2332 = smul.u32 16, %s19
          %s2334 = ssub.s32 2048, 2048
          %2335 = vsyncadd %s2325, %s2334
          %s2336 = smul.addr %s2332, 128
          %s2337 = scalar_lea.hbm %s5, %s2336
          %s2338 = sshll.u32 %s2328, 4
          %s2339 = int_to_ptr.vmem [resolvable:$true] %s2338
          %2344 = dma.vmem_to_hbm [thread:$0]  %s2339, 2048, %s2337, %s2325, 128, 128, 8
        $region44: #{mention_level_forward.1} parent=39 // pred_fallthru
          _
      $region40: #{mention_level_forward.1} parent=5 // pred_fallthru
        _
      %p2345 = scmp.le.s32.totalorder 2, %s14
      // Predicated region
      $region45: #{mention_level_forward.1} parent=5 // pred_check
        %p2346 = pneg %p2345
      $region46: #{mention_level_forward.1} parent=5 // pred_check_branch
        %2348 = sbr.rel (%p2346) target = $region48
      $region47: #{mention_level_forward.1} parent=5 // pred_region
        %s2349 = ssub.s32 %s14, 2
        // Predicated region
        $region49: #{mention_level_forward.1} parent=47 // pred_check
          %p2350 = pneg %p163
        $region50: #{mention_level_forward.1} parent=47 // pred_check_branch
          %2352 = sbr.rel (%p2350) target = $region52
        $region51: #{mention_level_forward.1} parent=47 // pred_region
          %s2353 = sand.u32 %s148, 1
          %s2354 = scalar_lea.sflag [#allocation3], %s2353
          %s2355 = sand.u32 %s148, 1
          %s2356 = smul.addr %s2355, 128
          %s2357 = scalar_lea.vmem [#allocation2], %s2356
          %2358 = dma.done %s2354, 2048
        $region52: #{mention_level_forward.1} parent=47 // pred_fallthru
          _
      $region48: #{mention_level_forward.1} parent=5 // pred_fallthru
        _
    $region6: #{mention_level_forward.1} parent=1 // loop_footer
      %s18 = sadd.s32 1, %s14
    $region7: #{mention_level_forward.1} parent=1 // loop_footer_branch
      %13 = sbr.rel target = $region3
    $region8: #{mention_level_forward.1} parent=1 // loop_exit
      _
    %2359 = vsyncpa [#allocation3], 1
    %s2360 = scalar_lea.sflag [#allocation3], 1
    %2361 = vsyncpa %s2360, 1

</llo_original>
